<compile_context>
chip_gen: v7x
topology: tpu7x:2x2x1
jax: 0.10.0
libtpu: 0.0.40
codegen_flags: <defaults>
</compile_context>

<pallas_src>
import functools

import jax
import jax.numpy as jnp
import numpy as np
from jax.experimental import pallas as pl
from jax.experimental.pallas import tpu as pltpu

_SQRT_2_OVER_PI = 0.7978845608028654
_BF16 = jnp.bfloat16


def _gspec(grid, in_specs, out_specs, scratch_shapes=()):
    return pltpu.PrefetchScalarGridSpec(
        num_scalar_prefetch=0, grid=grid, in_specs=in_specs, out_specs=out_specs,
        scratch_shapes=list(scratch_shapes))


def _pick_row_tile(rows, row_bytes, vmem_budget=12 << 20):
    # Largest row tile (multiple of 8 sublanes) that divides `rows` and keeps the
    # (double-buffered) per-step working set under a VMEM budget.
    for t in (1024, 512, 256, 128, 64, 32, 16, 8):
        if t <= rows and rows % t == 0 and 2 * t * row_bytes <= vmem_budget:
            return t
    return rows


def _layer_norm_f32(x, w, b, eps):
    mu = jnp.mean(x, axis=-1, keepdims=True)
    xc = x - mu
    var = jnp.mean(xc * xc, axis=-1, keepdims=True)
    return xc * jax.lax.rsqrt(var + eps) * w + b


def _gelu_tanh(x):
    # TODO(synk): PyTorch nn.GELU() defaults to the exact erf form; the tanh
    # approximation is used here (and in the reference) for guaranteed Mosaic lowering.
    return 0.5 * x * (1.0 + jnp.tanh(_SQRT_2_OVER_PI * (x + 0.044715 * x * x * x)))


# ----------------------------------------------------------------------------- kernels
def _embed_kernel(p_ref, w_ref, b_ref, pos_ref, o_ref):
    # patches @ W_patch (bf16 x bf16 -> f32 acc) + bias + pos_embedding.
    p = p_ref[0].astype(_BF16)                                    # (N, C_in*P*P)
    o_ref[0] = (jnp.dot(p, w_ref[...], preferred_element_type=jnp.float32)
                + b_ref[...] + pos_ref[0]).astype(o_ref.dtype)


def _layer_kernel(x_ref, ln1_w_ref, ln1_b_ref, wqkv_ref, wo_ref, bo_ref,
                  ln2_w_ref, ln2_b_ref, w1_ref, b1_ref, w2_ref, b2_ref,
                  o_ref, ho_ref, *, heads, dim_head, scale, eps):
    """One full transformer layer (PreNorm+MHSA+residual, PreNorm+MLP+residual)."""
    x = x_ref[0]                                                  # (N, D) f32 residual

    # --- PreNorm 1 + fused QKV projection ---
    xn = _layer_norm_f32(x, ln1_w_ref[...], ln1_b_ref[...], eps)
    inner = heads * dim_head
    qkv = jnp.dot(xn.astype(_BF16), wqkv_ref[...],
                  preferred_element_type=jnp.float32)             # (N, 3*inner) f32

    # --- multi-head softmax attention (static head loop, scratch-resident outputs) ---
    for h in range(heads):
        sl = slice(h * dim_head, (h + 1) * dim_head)
        qh = (qkv[:, sl] * scale).astype(_BF16)                   # scale folded into q
        kh = qkv[:, inner + h * dim_head: inner + (h + 1) * dim_head].astype(_BF16)
        vh = qkv[:, 2 * inner + h * dim_head: 2 * inner + (h + 1) * dim_head].astype(_BF16)
        # q.k^T contracting the last dims of both operands (no explicit transpose).
        dots = jax.lax.dot_general(qh, kh, (((1,), (1,)), ((), ())),
                                   preferred_element_type=jnp.float32)   # (N, N) f32
        m = jnp.max(dots, axis=-1, keepdims=True)
        e = jnp.exp(dots - m)
        s = jnp.sum(e, axis=-1, keepdims=True)
        r = pl.reciprocal(s, approx=True)                         # EUP reciprocal
        r = r * (2.0 - s * r)                                     # one Newton step
        attn = (e * r).astype(_BF16)                              # dropout p=0 -> identity
        pv = jnp.dot(attn, vh, preferred_element_type=jnp.float32)
        ho_ref[:, sl] = pv                                        # (N, dim_head) slice write

    # --- single full-width output projection + residual ---
    attn_out = jnp.dot(ho_ref[...].astype(_BF16), wo_ref[...],
                       preferred_element_type=jnp.float32) + bo_ref[...]
    x = x + attn_out

    # --- PreNorm 2 + MLP (GELU) + residual ---
    xn2 = _layer_norm_f32(x, ln2_w_ref[...], ln2_b_ref[...], eps)
    h1 = jnp.dot(xn2.astype(_BF16), w1_ref[...],
                 preferred_element_type=jnp.float32) + b1_ref[...]
    h1 = _gelu_tanh(h1)
    y = jnp.dot(h1.astype(_BF16), w2_ref[...],
                preferred_element_type=jnp.float32) + b2_ref[...]
    o_ref[0] = (x + y).astype(o_ref.dtype)


def _head_kernel(x_ref, ln_w_ref, ln_b_ref, wbd_ref, b_ref, xb_ref, o_ref, *, eps):
    # LayerNorm + lane-dense block-diagonal 1x1-conv projection + residual(xb), fused.
    z = _layer_norm_f32(x_ref[...], ln_w_ref[...], ln_b_ref[...], eps)
    o_ref[...] = (jnp.dot(z.astype(_BF16), wbd_ref[...],
                          preferred_element_type=jnp.float32)
                  + b_ref[...] + xb_ref[...]).astype(o_ref.dtype)


# ----------------------------------------------------------------------------- wrappers
def patch_embed(patches, w_bf16, b, pos):
    B, N, PD = patches.shape
    D = w_bf16.shape[1]
    return pl.pallas_call(
        _embed_kernel,
        out_shape=jax.ShapeDtypeStruct((B, N, D), jnp.float32),
        grid_spec=_gspec(
            (B,),
            [pl.BlockSpec((1, N, PD), lambda b: (b, 0, 0)),
             pl.BlockSpec((PD, D), lambda b: (0, 0)),
             pl.BlockSpec((1, D), lambda b: (0, 0)),
             pl.BlockSpec((1, N, D), lambda b: (0, 0, 0))],
            pl.BlockSpec((1, N, D), lambda b: (b, 0, 0))),
        compiler_params=pltpu.CompilerParams(dimension_semantics=("parallel",)),
    )(patches, w_bf16, b.reshape(1, D), pos)


def transformer_layer(x, ln1_w, ln1_b, w_qkv, w_out, b_out,
                      ln2_w, ln2_b, w1, b1, w2, b2, *, heads, dim_head):
    B, N, D = x.shape
    inner = heads * dim_head
    hidden = w1.shape[1]
    kernel = functools.partial(_layer_kernel, heads=heads, dim_head=dim_head,
                               scale=dim_head ** (-0.5), eps=1e-5)
    const = lambda shape: pl.BlockSpec(shape, lambda b: tuple(0 for _ in shape))
    return pl.pallas_call(
        kernel,
        out_shape=jax.ShapeDtypeStruct((B, N, D), jnp.float32),
        grid_spec=_gspec(
            (B,),
            [pl.BlockSpec((1, N, D), lambda b: (b, 0, 0)),
             const((1, D)), const((1, D)),                       # ln1 w/b
             const((D, 3 * inner)), const((inner, D)), const((1, D)),   # qkv, out proj
             const((1, D)), const((1, D)),                       # ln2 w/b
             const((D, hidden)), const((1, hidden)),             # mlp w1/b1
             const((hidden, D)), const((1, D))],                 # mlp w2/b2
            pl.BlockSpec((1, N, D), lambda b: (b, 0, 0)),
            scratch_shapes=[pltpu.VMEM((N, inner), jnp.float32)]),
        compiler_params=pltpu.CompilerParams(dimension_semantics=("parallel",)),
    )(x,
      ln1_w.reshape(1, D), ln1_b.reshape(1, D),
      w_qkv.astype(_BF16), w_out.astype(_BF16), b_out.reshape(1, D),
      ln2_w.reshape(1, D), ln2_b.reshape(1, D),
      w1.astype(_BF16), b1.reshape(1, hidden), w2.astype(_BF16), b2.reshape(1, D))


def head_ln_proj(x_rows, ln_w, ln_b, w_bd, bias, xb_rows):
    R, D = x_rows.shape
    O = w_bd.shape[1]
    t = _pick_row_tile(R, row_bytes=4 * (D + 2 * O))
    kernel = functools.partial(_head_kernel, eps=1e-5)
    return pl.pallas_call(
        kernel,
        out_shape=jax.ShapeDtypeStruct((R, O), jnp.float32),
        grid_spec=_gspec(
            (R // t,),
            [pl.BlockSpec((t, D), lambda i: (i, 0)),
             pl.BlockSpec((1, D), lambda i: (0, 0)),
             pl.BlockSpec((1, D), lambda i: (0, 0)),
             pl.BlockSpec((D, O), lambda i: (0, 0)),
             pl.BlockSpec((1, O), lambda i: (0, 0)),
             pl.BlockSpec((t, O), lambda i: (i, 0))],
            pl.BlockSpec((t, O), lambda i: (i, 0))),
        compiler_params=pltpu.CompilerParams(dimension_semantics=("parallel",)),
    )(x_rows, ln_w.reshape(1, D), ln_b.reshape(1, D),
      w_bd.astype(_BF16), bias.reshape(1, O), xb_rows)


# ----------------------------------------------------------------------------- full forward (Pallas)
def vit_forward_pallas(params, xb, obs, mask, cfg):
    B = xb.shape[0]
    P, D = cfg["patch"], cfg["dim"]
    H_img = W_img = cfg["image"]
    gh, gw = H_img // P, W_img // P
    N = gh * gw
    C_in = cfg["in_chans"]
    out_ch = cfg["out_chans"]

    # --- patch embedding (Conv2d k=stride=patch == matmul over flattened patches) ---
    x = jnp.concatenate([xb, obs * mask], axis=1)                       # (B, C_in, H, W)
    patches = x.reshape(B, C_in, gh, P, gw, P)
    patches = jnp.transpose(patches, (0, 2, 4, 1, 3, 5)).reshape(B, N, C_in * P * P)
    w_patch = params["conv_w"].reshape(D, C_in * P * P).T               # (C_in*P*P, D)
    tok = patch_embed(patches, w_patch.astype(_BF16), params["conv_b"], params["pos"])
    # emb_dropout p=0.0 -> identity

    # --- transformer decoder: one fused Pallas kernel per layer ---
    for lyr in params["layers"]:
        tok = transformer_layer(tok, lyr["ln1_w"], lyr["ln1_b"],
                                lyr["w_qkv"], lyr["w_out"], lyr["b_out"],
                                lyr["ln2_w"], lyr["ln2_b"],
                                lyr["w1"], lyr["b1"], lyr["w2"], lyr["b2"],
                                heads=cfg["heads"], dim_head=cfg["dim_head"])

    # --- head: fused LN + lane-dense block-diagonal 1x1-conv projection + residual ---
    c_mid = D // (P * P)
    w1x1 = params["head_conv_w"].reshape(out_ch, c_mid)                 # (out_ch, c_mid)
    # Block-diagonal weight: rows laid out as (p1, p2, c_mid), cols as (p1, p2, out_ch).
    w_bd = jnp.kron(jnp.eye(P * P, dtype=jnp.float32), w1x1.T)          # (D, P*P*out_ch)
    bias = jnp.tile(params["head_conv_b"], P * P)                       # (P*P*out_ch,)
    xbr = xb.reshape(B, out_ch, gh, P, gw, P)
    xbr = jnp.transpose(xbr, (0, 2, 4, 3, 5, 1)).reshape(B * N, P * P * out_ch)
    y = head_ln_proj(tok.reshape(B * N, D), params["head_ln_w"], params["head_ln_b"],
                     w_bd, bias, xbr)                                   # (B*N, P*P*out_ch)
    y = y.reshape(B, gh, gw, P, P, out_ch)
    y = jnp.transpose(y, (0, 5, 1, 3, 2, 4)).reshape(B, out_ch, H_img, W_img)
    return y


# ----------------------------------------------------------------------------- pure-JAX reference
def _layer_norm_ref(x, w, b, eps=1e-5):
    mu = jnp.mean(x, axis=-1, keepdims=True)
    xc = x - mu
    var = jnp.mean(xc * xc, axis=-1, keepdims=True)
    return xc * jax.lax.rsqrt(var + eps) * w + b


def vit_forward_ref(params, xb, obs, mask, cfg, bf16_ops=False):
    # bf16_ops=True mirrors the kernel numerics (matmul operands quantized to bf16,
    # f32 accumulation); bf16_ops=False is the plain f32 module semantics.
    c = (lambda t: t.astype(_BF16).astype(jnp.float32)) if bf16_ops else (lambda t: t)
    B = xb.shape[0]
    P, D = cfg["patch"], cfg["dim"]
    H, DH = cfg["heads"], cfg["dim_head"]
    inner = H * DH
    scale = DH ** (-0.5)

    x = jnp.concatenate([xb, obs * mask], axis=1)
    y = jax.lax.conv_general_dilated(c(x), c(params["conv_w"]), (P, P), "VALID",
                                     dimension_numbers=("NCHW", "OIHW", "NCHW"))
    y = y + params["conv_b"][None, :, None, None]
    gh, gw = y.shape[2], y.shape[3]
    tok = jnp.transpose(y, (0, 2, 3, 1)).reshape(B, gh * gw, D) + params["pos"]

    for lyr in params["layers"]:
        xn = _layer_norm_ref(tok, lyr["ln1_w"], lyr["ln1_b"])
        qkv = c(xn) @ c(lyr["w_qkv"])
        q, k, v = jnp.split(qkv, 3, axis=-1)
        split = lambda t: jnp.transpose(t.reshape(B, -1, H, DH), (0, 2, 1, 3))
        q, k, v = split(q), split(k), split(v)
        dots = jnp.einsum("bhnd,bhmd->bhnm", c(q * scale), c(k))
        attn = jax.nn.softmax(dots, axis=-1)
        o = jnp.einsum("bhnm,bhmd->bhnd", c(attn), c(v))
        o = jnp.transpose(o, (0, 2, 1, 3)).reshape(B, -1, inner)
        tok = c(o) @ c(lyr["w_out"]) + lyr["b_out"] + tok

        xn = _layer_norm_ref(tok, lyr["ln2_w"], lyr["ln2_b"])
        hdn = _gelu_tanh(c(xn) @ c(lyr["w1"]) + lyr["b1"])
        tok = c(hdn) @ c(lyr["w2"]) + lyr["b2"] + tok

    z = _layer_norm_ref(tok, params["head_ln_w"], params["head_ln_b"])
    c_mid = D // (P * P)
    z = z.reshape(B, gh, gw, P, P, c_mid)
    z = jnp.transpose(z, (0, 5, 1, 3, 2, 4)).reshape(B, c_mid, gh * P, gw * P)
    w1x1 = params["head_conv_w"].reshape(cfg["out_chans"], c_mid)
    out = jnp.einsum("bchw,oc->bohw", c(z), c(w1x1)) + params["head_conv_b"][None, :, None, None]
    return out + xb


# ----------------------------------------------------------------------------- demo
if __name__ == "__main__":
    # Small config consistent with the module: dim divisible by patch_h*patch_w,
    # xb channels == out_chans (for the final residual add).
    IMG, P = 16, 4
    DIM, HEADS, DIM_HEAD, DEPTH = 32, 2, 16, 2
    MLP = 2 * DIM
    XB_CH, OBS_CH = 2, 2
    IN_CHANS, OUT_CHANS = XB_CH + OBS_CH, XB_CH
    B = 2
    N = (IMG // P) ** 2
    INNER = HEADS * DIM_HEAD
    C_MID = DIM // (P * P)

    cfg = dict(image=IMG, patch=P, dim=DIM, heads=HEADS, dim_head=DIM_HEAD,
               in_chans=IN_CHANS, out_chans=OUT_CHANS)

    keys = iter(jax.random.split(jax.random.PRNGKey(0), 64))

    def nrm(shape, std=0.02):
        return (std * jax.random.normal(next(keys), shape)).astype(jnp.float32)

    layers = []
    for _ in range(DEPTH):
        layers.append(dict(
            ln1_w=(jnp.ones((DIM,), jnp.float32) + nrm((DIM,), 0.05)),
            ln1_b=nrm((DIM,), 0.02),
            w_qkv=nrm((DIM, 3 * INNER), 0.05),      # to_qkv.weight.T (no bias)
            w_out=nrm((INNER, DIM), 0.05),          # to_out[0].weight.T
            b_out=nrm((DIM,), 0.02),
            ln2_w=(jnp.ones((DIM,), jnp.float32) + nrm((DIM,), 0.05)),
            ln2_b=nrm((DIM,), 0.02),
            w1=nrm((DIM, MLP), 0.05), b1=nrm((MLP,), 0.02),
            w2=nrm((MLP, DIM), 0.05), b2=nrm((DIM,), 0.02)))

    params = dict(
        conv_w=nrm((DIM, IN_CHANS, P, P), 0.05),
        conv_b=nrm((DIM,), 0.02),
        pos=nrm((1, N, DIM), 0.02),
        layers=layers,
        head_ln_w=(jnp.ones((DIM,), jnp.float32) + nrm((DIM,), 0.05)),
        head_ln_b=nrm((DIM,), 0.02),
        head_conv_w=nrm((OUT_CHANS, C_MID, 1, 1), 0.1),
        head_conv_b=nrm((OUT_CHANS,), 0.02))

    xb = jax.random.normal(next(keys), (B, XB_CH, IMG, IMG), dtype=jnp.float32)
    obs = jax.random.normal(next(keys), (B, OBS_CH, IMG, IMG), dtype=jnp.float32)
    mask = (jax.random.uniform(next(keys), (B, OBS_CH, IMG, IMG)) > 0.5).astype(jnp.float32)

    fwd = jax.jit(functools.partial(vit_forward_pallas, cfg=cfg))
    out = jax.block_until_ready(fwd(params, xb, obs, mask))

    # Tight check vs. a reference that mirrors the kernel numerics (bf16 operands,
    # f32 accumulation), looser check vs. the plain f32 module semantics.
    ref_bf16 = vit_forward_ref(params, xb, obs, mask, cfg, bf16_ops=True)
    ref_f32 = vit_forward_ref(params, xb, obs, mask, cfg, bf16_ops=False)
    np.testing.assert_allclose(np.asarray(out), np.asarray(ref_bf16), rtol=1e-3, atol=1e-3)
    np.testing.assert_allclose(np.asarray(out), np.asarray(ref_f32), rtol=1e-2, atol=1e-2)
    print("KERNEL_OK")
</pallas_src>

<mosaic_0001>
module attributes {stable_mosaic.version = 11 : i64} {
  func.func @_embed_kernel(%arg0: i32, %arg1: memref<1x16x64xf32, #tpu.memory_space<vmem>>, %arg2: memref<64x32xbf16, #tpu.memory_space<vmem>>, %arg3: memref<1x32xf32, #tpu.memory_space<vmem>>, %arg4: memref<1x16x32xf32, #tpu.memory_space<vmem>>, %arg5: memref<1x16x32xf32, #tpu.memory_space<vmem>>) attributes {dimension_semantics = [#tpu.dimension_semantics<parallel>], iteration_bounds = array<i64: 2>, scalar_prefetch = 0 : i64, scratch_operands = 0 : i64, tpu.core_type = #tpu.core_type<tc>, window_params = [{transform_indices = @transform_0, window_bounds = array<i64: 1, 16, 64>}, {pipeline_mode = #tpu.pipeline_mode<synchronous>, transform_indices = @transform_1, window_bounds = array<i64: 64, 32>}, {pipeline_mode = #tpu.pipeline_mode<synchronous>, transform_indices = @transform_2, window_bounds = array<i64: 1, 32>}, {pipeline_mode = #tpu.pipeline_mode<synchronous>, transform_indices = @transform_3, window_bounds = array<i64: 1, 16, 32>}, {transform_indices = @transform_4, window_bounds = array<i64: 1, 16, 32>}]} {
    %c0 = arith.constant 0 : index
    %c0_0 = arith.constant 0 : index
    %c0_1 = arith.constant 0 : index
    %0 = vector.load %arg1[%c0, %c0_0, %c0_1] : memref<1x16x64xf32, #tpu.memory_space<vmem>>, vector<1x16x64xf32>
    %1 = vector.shape_cast %0 : vector<1x16x64xf32> to vector<16x64xf32>
    %2 = arith.truncf %1 : vector<16x64xf32> to vector<16x64xbf16>
    %c0_2 = arith.constant 0 : index
    %c0_3 = arith.constant 0 : index
    %3 = vector.load %arg2[%c0_2, %c0_3] : memref<64x32xbf16, #tpu.memory_space<vmem>>, vector<64x32xbf16>
    %cst = arith.constant dense<0.000000e+00> : vector<16x32xf32>
    %4 = tpu.matmul %2, %3, %cst {dimension_numbers = #tpu.dot_dimension_numbers<[1], [0], [0], [1], [0, 0, 1, 1], [], []>} : vector<16x64xbf16>, vector<64x32xbf16>, vector<16x32xf32> -> vector<16x32xf32>
    %c0_4 = arith.constant 0 : index
    %c0_5 = arith.constant 0 : index
    %5 = vector.load %arg3[%c0_4, %c0_5] : memref<1x32xf32, #tpu.memory_space<vmem>>, vector<1x32xf32>
    %6 = vector.broadcast %5 : vector<1x32xf32> to vector<16x32xf32>
    %7 = arith.addf %4, %6 : vector<16x32xf32>
    %c0_6 = arith.constant 0 : index
    %c0_7 = arith.constant 0 : index
    %c0_8 = arith.constant 0 : index
    %8 = vector.load %arg4[%c0_6, %c0_7, %c0_8] : memref<1x16x32xf32, #tpu.memory_space<vmem>>, vector<1x16x32xf32>
    %9 = vector.shape_cast %8 : vector<1x16x32xf32> to vector<16x32xf32>
    %10 = arith.addf %7, %9 : vector<16x32xf32>
    %c0_9 = arith.constant 0 : index
    %c0_10 = arith.constant 0 : index
    %c0_11 = arith.constant 0 : index
    %11 = vector.load %arg5[%c0_9, %c0_10, %c0_11] : memref<1x16x32xf32, #tpu.memory_space<vmem>>, vector<1x16x32xf32>
    %12 = vector.shape_cast %11 : vector<1x16x32xf32> to vector<16x32xf32>
    %13 = vector.shape_cast %10 : vector<16x32xf32> to vector<1x16x32xf32>
    tpu.vector_store %arg5[%c0_9, %c0_10, %c0_11], %13 {strides = array<i32>} : memref<1x16x32xf32, #tpu.memory_space<vmem>>, vector<1x16x32xf32>,
    return
  }
  func.func @transform_0(%arg0: i32) -> (i32, i32, i32) {
    %c0_i32 = arith.constant 0 : i32
    %c0_i32_0 = arith.constant 0 : i32
    %c0_i32_1 = arith.constant 0 : i32
    return %arg0, %c0_i32, %c0_i32_0 : i32, i32, i32
  }
  func.func @transform_1(%arg0: i32) -> (i32, i32) {
    %c0_i32 = arith.constant 0 : i32
    %c0_i32_0 = arith.constant 0 : i32
    %c0_i32_1 = arith.constant 0 : i32
    return %c0_i32, %c0_i32_0 : i32, i32
  }
  func.func @transform_2(%arg0: i32) -> (i32, i32) {
    %c0_i32 = arith.constant 0 : i32
    %c0_i32_0 = arith.constant 0 : i32
    %c0_i32_1 = arith.constant 0 : i32
    return %c0_i32, %c0_i32_0 : i32, i32
  }
  func.func @transform_3(%arg0: i32) -> (i32, i32, i32) {
    %c0_i32 = arith.constant 0 : i32
    %c0_i32_0 = arith.constant 0 : i32
    %c0_i32_1 = arith.constant 0 : i32
    %c0_i32_2 = arith.constant 0 : i32
    return %c0_i32, %c0_i32_0, %c0_i32_1 : i32, i32, i32
  }
  func.func @transform_4(%arg0: i32) -> (i32, i32, i32) {
    %c0_i32 = arith.constant 0 : i32
    %c0_i32_0 = arith.constant 0 : i32
    %c0_i32_1 = arith.constant 0 : i32
    return %arg0, %c0_i32, %c0_i32_0 : i32, i32, i32
  }
}

module attributes {stable_mosaic.version = 11 : i64} {
  func.func @_layer_kernel(%arg0: i32, %arg1: memref<1x16x32xf32, #tpu.memory_space<vmem>>, %arg2: memref<1x32xf32, #tpu.memory_space<vmem>>, %arg3: memref<1x32xf32, #tpu.memory_space<vmem>>, %arg4: memref<32x96xbf16, #tpu.memory_space<vmem>>, %arg5: memref<32x32xbf16, #tpu.memory_space<vmem>>, %arg6: memref<1x32xf32, #tpu.memory_space<vmem>>, %arg7: memref<1x32xf32, #tpu.memory_space<vmem>>, %arg8: memref<1x32xf32, #tpu.memory_space<vmem>>, %arg9: memref<32x64xbf16, #tpu.memory_space<vmem>>, %arg10: memref<1x64xf32, #tpu.memory_space<vmem>>, %arg11: memref<64x32xbf16, #tpu.memory_space<vmem>>, %arg12: memref<1x32xf32, #tpu.memory_space<vmem>>, %arg13: memref<1x16x32xf32, #tpu.memory_space<vmem>>, %arg14: memref<16x32xf32, #tpu.memory_space<vmem>>) attributes {dimension_semantics = [#tpu.dimension_semantics<parallel>], iteration_bounds = array<i64: 2>, scalar_prefetch = 0 : i64, scratch_operands = 1 : i64, tpu.core_type = #tpu.core_type<tc>, window_params = [{transform_indices = @transform_0, window_bounds = array<i64: 1, 16, 32>}, {pipeline_mode = #tpu.pipeline_mode<synchronous>, transform_indices = @transform_1, window_bounds = array<i64: 1, 32>}, {pipeline_mode = #tpu.pipeline_mode<synchronous>, transform_indices = @transform_2, window_bounds = array<i64: 1, 32>}, {pipeline_mode = #tpu.pipeline_mode<synchronous>, transform_indices = @transform_3, window_bounds = array<i64: 32, 96>}, {pipeline_mode = #tpu.pipeline_mode<synchronous>, transform_indices = @transform_4, window_bounds = array<i64: 32, 32>}, {pipeline_mode = #tpu.pipeline_mode<synchronous>, transform_indices = @transform_5, window_bounds = array<i64: 1, 32>}, {pipeline_mode = #tpu.pipeline_mode<synchronous>, transform_indices = @transform_6, window_bounds = array<i64: 1, 32>}, {pipeline_mode = #tpu.pipeline_mode<synchronous>, transform_indices = @transform_7, window_bounds = array<i64: 1, 32>}, {pipeline_mode = #tpu.pipeline_mode<synchronous>, transform_indices = @transform_8, window_bounds = array<i64: 32, 64>}, {pipeline_mode = #tpu.pipeline_mode<synchronous>, transform_indices = @transform_9, window_bounds = array<i64: 1, 64>}, {pipeline_mode = #tpu.pipeline_mode<synchronous>, transform_indices = @transform_10, window_bounds = array<i64: 64, 32>}, {pipeline_mode = #tpu.pipeline_mode<synchronous>, transform_indices = @transform_11, window_bounds = array<i64: 1, 32>}, {transform_indices = @transform_12, window_bounds = array<i64: 1, 16, 32>}]} {
    %c0 = arith.constant 0 : index
    %c0_0 = arith.constant 0 : index
    %c0_1 = arith.constant 0 : index
    %0 = vector.load %arg1[%c0, %c0_0, %c0_1] : memref<1x16x32xf32, #tpu.memory_space<vmem>>, vector<1x16x32xf32>
    %1 = vector.shape_cast %0 : vector<1x16x32xf32> to vector<16x32xf32>
    %c0_2 = arith.constant 0 : index
    %c0_3 = arith.constant 0 : index
    %2 = vector.load %arg2[%c0_2, %c0_3] : memref<1x32xf32, #tpu.memory_space<vmem>>, vector<1x32xf32>
    %c0_4 = arith.constant 0 : index
    %c0_5 = arith.constant 0 : index
    %3 = vector.load %arg3[%c0_4, %c0_5] : memref<1x32xf32, #tpu.memory_space<vmem>>, vector<1x32xf32>
    %cst = arith.constant dense<0.000000e+00> : vector<16xf32>
    %4 = vector.multi_reduction <add>, %1, %cst [1] : vector<16x32xf32> to vector<16xf32>
    %5 = vector.shape_cast %4 : vector<16xf32> to vector<16x1xf32>
    %cst_6 = arith.constant 3.200000e+01 : f32
    %6 = vector.broadcast %cst_6 : f32 to vector<16x1xf32>
    %7 = arith.divf %5, %6 : vector<16x1xf32>
    %8 = vector.broadcast %7 : vector<16x1xf32> to vector<16x32xf32>
    %9 = arith.subf %1, %8 : vector<16x32xf32>
    %10 = arith.mulf %9, %9 : vector<16x32xf32>
    %cst_7 = arith.constant dense<0.000000e+00> : vector<16xf32>
    %11 = vector.multi_reduction <add>, %10, %cst_7 [1] : vector<16x32xf32> to vector<16xf32>
    %12 = vector.shape_cast %11 : vector<16xf32> to vector<16x1xf32>
    %cst_8 = arith.constant 3.200000e+01 : f32
    %13 = vector.broadcast %cst_8 : f32 to vector<16x1xf32>
    %14 = arith.divf %12, %13 : vector<16x1xf32>
    %cst_9 = arith.constant 9.99999974E-6 : f32
    %15 = vector.broadcast %cst_9 : f32 to vector<16x1xf32>
    %16 = arith.addf %14, %15 : vector<16x1xf32>
    %17 = math.rsqrt %16 : vector<16x1xf32>
    %18 = vector.broadcast %17 : vector<16x1xf32> to vector<16x32xf32>
    %19 = arith.mulf %9, %18 : vector<16x32xf32>
    %20 = vector.broadcast %2 : vector<1x32xf32> to vector<16x32xf32>
    %21 = arith.mulf %19, %20 : vector<16x32xf32>
    %22 = vector.broadcast %3 : vector<1x32xf32> to vector<16x32xf32>
    %23 = arith.addf %21, %22 : vector<16x32xf32>
    %24 = arith.truncf %23 : vector<16x32xf32> to vector<16x32xbf16>
    %c0_10 = arith.constant 0 : index
    %c0_11 = arith.constant 0 : index
    %25 = vector.load %arg4[%c0_10, %c0_11] : memref<32x96xbf16, #tpu.memory_space<vmem>>, vector<32x96xbf16>
    %cst_12 = arith.constant dense<0.000000e+00> : vector<16x96xf32>
    %26 = tpu.matmul %24, %25, %cst_12 {dimension_numbers = #tpu.dot_dimension_numbers<[1], [0], [0], [1], [0, 0, 1, 1], [], []>} : vector<16x32xbf16>, vector<32x96xbf16>, vector<16x96xf32> -> vector<16x96xf32>
    %27 = vector.extract_strided_slice %26 {offsets = [0, 0], sizes = [16, 16], strides = [1, 1]} : vector<16x96xf32> to vector<16x16xf32>
    %cst_13 = arith.constant 2.500000e-01 : f32
    %28 = vector.broadcast %cst_13 : f32 to vector<16x16xf32>
    %29 = arith.mulf %27, %28 : vector<16x16xf32>
    %30 = arith.truncf %29 : vector<16x16xf32> to vector<16x16xbf16>
    %31 = vector.extract_strided_slice %26 {offsets = [0, 32], sizes = [16, 16], strides = [1, 1]} : vector<16x96xf32> to vector<16x16xf32>
    %32 = arith.truncf %31 : vector<16x16xf32> to vector<16x16xbf16>
    %33 = vector.extract_strided_slice %26 {offsets = [0, 64], sizes = [16, 16], strides = [1, 1]} : vector<16x96xf32> to vector<16x16xf32>
    %34 = arith.truncf %33 : vector<16x16xf32> to vector<16x16xbf16>
    %cst_14 = arith.constant dense<0.000000e+00> : vector<16x16xf32>
    %35 = tpu.matmul %30, %32, %cst_14 {dimension_numbers = #tpu.dot_dimension_numbers<[1], [1], [0], [0], [0, 0, 1, 0], [], []>} : vector<16x16xbf16>, vector<16x16xbf16>, vector<16x16xf32> -> vector<16x16xf32>
    %cst_15 = arith.constant dense<0xFF800000> : vector<16xf32>
    %36 = vector.multi_reduction <maximumf>, %35, %cst_15 [1] : vector<16x16xf32> to vector<16xf32>
    %37 = vector.shape_cast %36 : vector<16xf32> to vector<16x1xf32>
    %38 = vector.broadcast %37 : vector<16x1xf32> to vector<16x16xf32>
    %39 = arith.subf %35, %38 : vector<16x16xf32>
    %40 = math.exp %39 : vector<16x16xf32>
    %cst_16 = arith.constant dense<0.000000e+00> : vector<16xf32>
    %41 = vector.multi_reduction <add>, %40, %cst_16 [1] : vector<16x16xf32> to vector<16xf32>
    %42 = vector.shape_cast %41 : vector<16xf32> to vector<16x1xf32>
    %43 = tpu.reciprocal %42 {approx = true} : vector<16x1xf32> -> vector<16x1xf32>
    %44 = arith.mulf %42, %43 : vector<16x1xf32>
    %cst_17 = arith.constant 2.000000e+00 : f32
    %45 = vector.broadcast %cst_17 : f32 to vector<16x1xf32>
    %46 = arith.subf %45, %44 : vector<16x1xf32>
    %47 = arith.mulf %43, %46 : vector<16x1xf32>
    %48 = vector.broadcast %47 : vector<16x1xf32> to vector<16x16xf32>
    %49 = arith.mulf %40, %48 : vector<16x16xf32>
    %50 = arith.truncf %49 : vector<16x16xf32> to vector<16x16xbf16>
    %cst_18 = arith.constant dense<0.000000e+00> : vector<16x16xf32>
    %51 = tpu.matmul %50, %34, %cst_18 {dimension_numbers = #tpu.dot_dimension_numbers<[1], [0], [0], [1], [0, 0, 1, 1], [], []>} : vector<16x16xbf16>, vector<16x16xbf16>, vector<16x16xf32> -> vector<16x16xf32>
    %c0_19 = arith.constant 0 : index
    %c0_20 = arith.constant 0 : index
    %52 = vector.load %arg14[%c0_19, %c0_20] : memref<16x32xf32, #tpu.memory_space<vmem>>, vector<16x16xf32>
    tpu.vector_store %arg14[%c0_19, %c0_20], %51 {strides = array<i32>} : memref<16x32xf32, #tpu.memory_space<vmem>>, vector<16x16xf32>,
    %53 = vector.extract_strided_slice %26 {offsets = [0, 16], sizes = [16, 16], strides = [1, 1]} : vector<16x96xf32> to vector<16x16xf32>
    %cst_21 = arith.constant 2.500000e-01 : f32
    %54 = vector.broadcast %cst_21 : f32 to vector<16x16xf32>
    %55 = arith.mulf %53, %54 : vector<16x16xf32>
    %56 = arith.truncf %55 : vector<16x16xf32> to vector<16x16xbf16>
    %57 = vector.extract_strided_slice %26 {offsets = [0, 48], sizes = [16, 16], strides = [1, 1]} : vector<16x96xf32> to vector<16x16xf32>
    %58 = arith.truncf %57 : vector<16x16xf32> to vector<16x16xbf16>
    %59 = vector.extract_strided_slice %26 {offsets = [0, 80], sizes = [16, 16], strides = [1, 1]} : vector<16x96xf32> to vector<16x16xf32>
    %60 = arith.truncf %59 : vector<16x16xf32> to vector<16x16xbf16>
    %cst_22 = arith.constant dense<0.000000e+00> : vector<16x16xf32>
    %61 = tpu.matmul %56, %58, %cst_22 {dimension_numbers = #tpu.dot_dimension_numbers<[1], [1], [0], [0], [0, 0, 1, 0], [], []>} : vector<16x16xbf16>, vector<16x16xbf16>, vector<16x16xf32> -> vector<16x16xf32>
    %cst_23 = arith.constant dense<0xFF800000> : vector<16xf32>
    %62 = vector.multi_reduction <maximumf>, %61, %cst_23 [1] : vector<16x16xf32> to vector<16xf32>
    %63 = vector.shape_cast %62 : vector<16xf32> to vector<16x1xf32>
    %64 = vector.broadcast %63 : vector<16x1xf32> to vector<16x16xf32>
    %65 = arith.subf %61, %64 : vector<16x16xf32>
    %66 = math.exp %65 : vector<16x16xf32>
    %cst_24 = arith.constant dense<0.000000e+00> : vector<16xf32>
    %67 = vector.multi_reduction <add>, %66, %cst_24 [1] : vector<16x16xf32> to vector<16xf32>
    %68 = vector.shape_cast %67 : vector<16xf32> to vector<16x1xf32>
    %69 = tpu.reciprocal %68 {approx = true} : vector<16x1xf32> -> vector<16x1xf32>
    %70 = arith.mulf %68, %69 : vector<16x1xf32>
    %cst_25 = arith.constant 2.000000e+00 : f32
    %71 = vector.broadcast %cst_25 : f32 to vector<16x1xf32>
    %72 = arith.subf %71, %70 : vector<16x1xf32>
    %73 = arith.mulf %69, %72 : vector<16x1xf32>
    %74 = vector.broadcast %73 : vector<16x1xf32> to vector<16x16xf32>
    %75 = arith.mulf %66, %74 : vector<16x16xf32>
    %76 = arith.truncf %75 : vector<16x16xf32> to vector<16x16xbf16>
    %cst_26 = arith.constant dense<0.000000e+00> : vector<16x16xf32>
    %77 = tpu.matmul %76, %60, %cst_26 {dimension_numbers = #tpu.dot_dimension_numbers<[1], [0], [0], [1], [0, 0, 1, 1], [], []>} : vector<16x16xbf16>, vector<16x16xbf16>, vector<16x16xf32> -> vector<16x16xf32>
    %c0_27 = arith.constant 0 : index
    %c16 = arith.constant 16 : index
    %78 = vector.load %arg14[%c0_27, %c16] : memref<16x32xf32, #tpu.memory_space<vmem>>, vector<16x16xf32>
    tpu.vector_store %arg14[%c0_27, %c16], %77 {strides = array<i32>} : memref<16x32xf32, #tpu.memory_space<vmem>>, vector<16x16xf32>,
    %c0_28 = arith.constant 0 : index
    %c0_29 = arith.constant 0 : index
    %79 = vector.load %arg14[%c0_28, %c0_29] : memref<16x32xf32, #tpu.memory_space<vmem>>, vector<16x32xf32>
    %80 = arith.truncf %79 : vector<16x32xf32> to vector<16x32xbf16>
    %c0_30 = arith.constant 0 : index
    %c0_31 = arith.constant 0 : index
    %81 = vector.load %arg5[%c0_30, %c0_31] : memref<32x32xbf16, #tpu.memory_space<vmem>>, vector<32x32xbf16>
    %cst_32 = arith.constant dense<0.000000e+00> : vector<16x32xf32>
    %82 = tpu.matmul %80, %81, %cst_32 {dimension_numbers = #tpu.dot_dimension_numbers<[1], [0], [0], [1], [0, 0, 1, 1], [], []>} : vector<16x32xbf16>, vector<32x32xbf16>, vector<16x32xf32> -> vector<16x32xf32>
    %c0_33 = arith.constant 0 : index
    %c0_34 = arith.constant 0 : index
    %83 = vector.load %arg6[%c0_33, %c0_34] : memref<1x32xf32, #tpu.memory_space<vmem>>, vector<1x32xf32>
    %84 = vector.broadcast %83 : vector<1x32xf32> to vector<16x32xf32>
    %85 = arith.addf %82, %84 : vector<16x32xf32>
    %86 = arith.addf %1, %85 : vector<16x32xf32>
    %c0_35 = arith.constant 0 : index
    %c0_36 = arith.constant 0 : index
    %87 = vector.load %arg7[%c0_35, %c0_36] : memref<1x32xf32, #tpu.memory_space<vmem>>, vector<1x32xf32>
    %c0_37 = arith.constant 0 : index
    %c0_38 = arith.constant 0 : index
    %88 = vector.load %arg8[%c0_37, %c0_38] : memref<1x32xf32, #tpu.memory_space<vmem>>, vector<1x32xf32>
    %cst_39 = arith.constant dense<0.000000e+00> : vector<16xf32>
    %89 = vector.multi_reduction <add>, %86, %cst_39 [1] : vector<16x32xf32> to vector<16xf32>
    %90 = vector.shape_cast %89 : vector<16xf32> to vector<16x1xf32>
    %cst_40 = arith.constant 3.200000e+01 : f32
    %91 = vector.broadcast %cst_40 : f32 to vector<16x1xf32>
    %92 = arith.divf %90, %91 : vector<16x1xf32>
    %93 = vector.broadcast %92 : vector<16x1xf32> to vector<16x32xf32>
    %94 = arith.subf %86, %93 : vector<16x32xf32>
    %95 = arith.mulf %94, %94 : vector<16x32xf32>
    %cst_41 = arith.constant dense<0.000000e+00> : vector<16xf32>
    %96 = vector.multi_reduction <add>, %95, %cst_41 [1] : vector<16x32xf32> to vector<16xf32>
    %97 = vector.shape_cast %96 : vector<16xf32> to vector<16x1xf32>
    %cst_42 = arith.constant 3.200000e+01 : f32
    %98 = vector.broadcast %cst_42 : f32 to vector<16x1xf32>
    %99 = arith.divf %97, %98 : vector<16x1xf32>
    %cst_43 = arith.constant 9.99999974E-6 : f32
    %100 = vector.broadcast %cst_43 : f32 to vector<16x1xf32>
    %101 = arith.addf %99, %100 : vector<16x1xf32>
    %102 = math.rsqrt %101 : vector<16x1xf32>
    %103 = vector.broadcast %102 : vector<16x1xf32> to vector<16x32xf32>
    %104 = arith.mulf %94, %103 : vector<16x32xf32>
    %105 = vector.broadcast %87 : vector<1x32xf32> to vector<16x32xf32>
    %106 = arith.mulf %104, %105 : vector<16x32xf32>
    %107 = vector.broadcast %88 : vector<1x32xf32> to vector<16x32xf32>
    %108 = arith.addf %106, %107 : vector<16x32xf32>
    %109 = arith.truncf %108 : vector<16x32xf32> to vector<16x32xbf16>
    %c0_44 = arith.constant 0 : index
    %c0_45 = arith.constant 0 : index
    %110 = vector.load %arg9[%c0_44, %c0_45] : memref<32x64xbf16, #tpu.memory_space<vmem>>, vector<32x64xbf16>
    %cst_46 = arith.constant dense<0.000000e+00> : vector<16x64xf32>
    %111 = tpu.matmul %109, %110, %cst_46 {dimension_numbers = #tpu.dot_dimension_numbers<[1], [0], [0], [1], [0, 0, 1, 1], [], []>} : vector<16x32xbf16>, vector<32x64xbf16>, vector<16x64xf32> -> vector<16x64xf32>
    %c0_47 = arith.constant 0 : index
    %c0_48 = arith.constant 0 : index
    %112 = vector.load %arg10[%c0_47, %c0_48] : memref<1x64xf32, #tpu.memory_space<vmem>>, vector<1x64xf32>
    %113 = vector.broadcast %112 : vector<1x64xf32> to vector<16x64xf32>
    %114 = arith.addf %111, %113 : vector<16x64xf32>
    %cst_49 = arith.constant 5.000000e-01 : f32
    %115 = vector.broadcast %cst_49 : f32 to vector<16x64xf32>
    %116 = arith.mulf %115, %114 : vector<16x64xf32>
    %cst_50 = arith.constant 4.471500e-02 : f32
    %117 = vector.broadcast %cst_50 : f32 to vector<16x64xf32>
    %118 = arith.mulf %117, %114 : vector<16x64xf32>
    %119 = arith.mulf %118, %114 : vector<16x64xf32>
    %120 = arith.mulf %119, %114 : vector<16x64xf32>
    %121 = arith.addf %114, %120 : vector<16x64xf32>
    %cst_51 = arith.constant 0.797884583 : f32
    %122 = vector.broadcast %cst_51 : f32 to vector<16x64xf32>
    %123 = arith.mulf %122, %121 : vector<16x64xf32>
    %124 = math.tanh %123 : vector<16x64xf32>
    %cst_52 = arith.constant 1.000000e+00 : f32
    %125 = vector.broadcast %cst_52 : f32 to vector<16x64xf32>
    %126 = arith.addf %125, %124 : vector<16x64xf32>
    %127 = arith.mulf %116, %126 : vector<16x64xf32>
    %128 = arith.truncf %127 : vector<16x64xf32> to vector<16x64xbf16>
    %c0_53 = arith.constant 0 : index
    %c0_54 = arith.constant 0 : index
    %129 = vector.load %arg11[%c0_53, %c0_54] : memref<64x32xbf16, #tpu.memory_space<vmem>>, vector<64x32xbf16>
    %cst_55 = arith.constant dense<0.000000e+00> : vector<16x32xf32>
    %130 = tpu.matmul %128, %129, %cst_55 {dimension_numbers = #tpu.dot_dimension_numbers<[1], [0], [0], [1], [0, 0, 1, 1], [], []>} : vector<16x64xbf16>, vector<64x32xbf16>, vector<16x32xf32> -> vector<16x32xf32>
    %c0_56 = arith.constant 0 : index
    %c0_57 = arith.constant 0 : index
    %131 = vector.load %arg12[%c0_56, %c0_57] : memref<1x32xf32, #tpu.memory_space<vmem>>, vector<1x32xf32>
    %132 = vector.broadcast %131 : vector<1x32xf32> to vector<16x32xf32>
    %133 = arith.addf %130, %132 : vector<16x32xf32>
    %134 = arith.addf %86, %133 : vector<16x32xf32>
    %c0_58 = arith.constant 0 : index
    %c0_59 = arith.constant 0 : index
    %c0_60 = arith.constant 0 : index
    %135 = vector.load %arg13[%c0_58, %c0_59, %c0_60] : memref<1x16x32xf32, #tpu.memory_space<vmem>>, vector<1x16x32xf32>
    %136 = vector.shape_cast %135 : vector<1x16x32xf32> to vector<16x32xf32>
    %137 = vector.shape_cast %134 : vector<16x32xf32> to vector<1x16x32xf32>
    tpu.vector_store %arg13[%c0_58, %c0_59, %c0_60], %137 {strides = array<i32>} : memref<1x16x32xf32, #tpu.memory_space<vmem>>, vector<1x16x32xf32>,
    return
  }
  func.func @transform_0(%arg0: i32) -> (i32, i32, i32) {
    %c0_i32 = arith.constant 0 : i32
    %c0_i32_0 = arith.constant 0 : i32
    %c0_i32_1 = arith.constant 0 : i32
    return %arg0, %c0_i32, %c0_i32_0 : i32, i32, i32
  }
  func.func @transform_1(%arg0: i32) -> (i32, i32) {
    %c0_i32 = arith.constant 0 : i32
    %c0_i32_0 = arith.constant 0 : i32
    %c0_i32_1 = arith.constant 0 : i32
    return %c0_i32, %c0_i32_0 : i32, i32
  }
  func.func @transform_2(%arg0: i32) -> (i32, i32) {
    %c0_i32 = arith.constant 0 : i32
    %c0_i32_0 = arith.constant 0 : i32
    %c0_i32_1 = arith.constant 0 : i32
    return %c0_i32, %c0_i32_0 : i32, i32
  }
  func.func @transform_3(%arg0: i32) -> (i32, i32) {
    %c0_i32 = arith.constant 0 : i32
    %c0_i32_0 = arith.constant 0 : i32
    %c0_i32_1 = arith.constant 0 : i32
    return %c0_i32, %c0_i32_0 : i32, i32
  }
  func.func @transform_4(%arg0: i32) -> (i32, i32) {
    %c0_i32 = arith.constant 0 : i32
    %c0_i32_0 = arith.constant 0 : i32
    %c0_i32_1 = arith.constant 0 : i32
    return %c0_i32, %c0_i32_0 : i32, i32
  }
  func.func @transform_5(%arg0: i32) -> (i32, i32) {
    %c0_i32 = arith.constant 0 : i32
    %c0_i32_0 = arith.constant 0 : i32
    %c0_i32_1 = arith.constant 0 : i32
    return %c0_i32, %c0_i32_0 : i32, i32
  }
  func.func @transform_6(%arg0: i32) -> (i32, i32) {
    %c0_i32 = arith.constant 0 : i32
    %c0_i32_0 = arith.constant 0 : i32
    %c0_i32_1 = arith.constant 0 : i32
    return %c0_i32, %c0_i32_0 : i32, i32
  }
  func.func @transform_7(%arg0: i32) -> (i32, i32) {
    %c0_i32 = arith.constant 0 : i32
    %c0_i32_0 = arith.constant 0 : i32
    %c0_i32_1 = arith.constant 0 : i32
    return %c0_i32, %c0_i32_0 : i32, i32
  }
  func.func @transform_8(%arg0: i32) -> (i32, i32) {
    %c0_i32 = arith.constant 0 : i32
    %c0_i32_0 = arith.constant 0 : i32
    %c0_i32_1 = arith.constant 0 : i32
    return %c0_i32, %c0_i32_0 : i32, i32
  }
  func.func @transform_9(%arg0: i32) -> (i32, i32) {
    %c0_i32 = arith.constant 0 : i32
    %c0_i32_0 = arith.constant 0 : i32
    %c0_i32_1 = arith.constant 0 : i32
    return %c0_i32, %c0_i32_0 : i32, i32
  }
  func.func @transform_10(%arg0: i32) -> (i32, i32) {
    %c0_i32 = arith.constant 0 : i32
    %c0_i32_0 = arith.constant 0 : i32
    %c0_i32_1 = arith.constant 0 : i32
    return %c0_i32, %c0_i32_0 : i32, i32
  }
  func.func @transform_11(%arg0: i32) -> (i32, i32) {
    %c0_i32 = arith.constant 0 : i32
    %c0_i32_0 = arith.constant 0 : i32
    %c0_i32_1 = arith.constant 0 : i32
    return %c0_i32, %c0_i32_0 : i32, i32
  }
  func.func @transform_12(%arg0: i32) -> (i32, i32, i32) {
    %c0_i32 = arith.constant 0 : i32
    %c0_i32_0 = arith.constant 0 : i32
    %c0_i32_1 = arith.constant 0 : i32
    return %arg0, %c0_i32, %c0_i32_0 : i32, i32, i32
  }
}

module attributes {stable_mosaic.version = 11 : i64} {
  func.func @_head_kernel(%arg0: i32, %arg1: memref<32x32xf32, #tpu.memory_space<vmem>>, %arg2: memref<1x32xf32, #tpu.memory_space<vmem>>, %arg3: memref<1x32xf32, #tpu.memory_space<vmem>>, %arg4: memref<32x32xbf16, #tpu.memory_space<vmem>>, %arg5: memref<1x32xf32, #tpu.memory_space<vmem>>, %arg6: memref<32x32xf32, #tpu.memory_space<vmem>>, %arg7: memref<32x32xf32, #tpu.memory_space<vmem>>) attributes {dimension_semantics = [#tpu.dimension_semantics<parallel>], iteration_bounds = array<i64: 1>, scalar_prefetch = 0 : i64, scratch_operands = 0 : i64, tpu.core_type = #tpu.core_type<tc>, window_params = [{transform_indices = @transform_0, window_bounds = array<i64: 32, 32>}, {pipeline_mode = #tpu.pipeline_mode<synchronous>, transform_indices = @transform_1, window_bounds = array<i64: 1, 32>}, {pipeline_mode = #tpu.pipeline_mode<synchronous>, transform_indices = @transform_2, window_bounds = array<i64: 1, 32>}, {pipeline_mode = #tpu.pipeline_mode<synchronous>, transform_indices = @transform_3, window_bounds = array<i64: 32, 32>}, {pipeline_mode = #tpu.pipeline_mode<synchronous>, transform_indices = @transform_4, window_bounds = array<i64: 1, 32>}, {transform_indices = @transform_5, window_bounds = array<i64: 32, 32>}, {transform_indices = @transform_6, window_bounds = array<i64: 32, 32>}]} {
    %c0 = arith.constant 0 : index
    %c0_0 = arith.constant 0 : index
    %0 = vector.load %arg1[%c0, %c0_0] : memref<32x32xf32, #tpu.memory_space<vmem>>, vector<32x32xf32>
    %c0_1 = arith.constant 0 : index
    %c0_2 = arith.constant 0 : index
    %1 = vector.load %arg2[%c0_1, %c0_2] : memref<1x32xf32, #tpu.memory_space<vmem>>, vector<1x32xf32>
    %c0_3 = arith.constant 0 : index
    %c0_4 = arith.constant 0 : index
    %2 = vector.load %arg3[%c0_3, %c0_4] : memref<1x32xf32, #tpu.memory_space<vmem>>, vector<1x32xf32>
    %cst = arith.constant dense<0.000000e+00> : vector<32xf32>
    %3 = vector.multi_reduction <add>, %0, %cst [1] : vector<32x32xf32> to vector<32xf32>
    %4 = vector.shape_cast %3 : vector<32xf32> to vector<32x1xf32>
    %cst_5 = arith.constant 3.200000e+01 : f32
    %5 = vector.broadcast %cst_5 : f32 to vector<32x1xf32>
    %6 = arith.divf %4, %5 : vector<32x1xf32>
    %7 = vector.broadcast %6 : vector<32x1xf32> to vector<32x32xf32>
    %8 = arith.subf %0, %7 : vector<32x32xf32>
    %9 = arith.mulf %8, %8 : vector<32x32xf32>
    %cst_6 = arith.constant dense<0.000000e+00> : vector<32xf32>
    %10 = vector.multi_reduction <add>, %9, %cst_6 [1] : vector<32x32xf32> to vector<32xf32>
    %11 = vector.shape_cast %10 : vector<32xf32> to vector<32x1xf32>
    %cst_7 = arith.constant 3.200000e+01 : f32
    %12 = vector.broadcast %cst_7 : f32 to vector<32x1xf32>
    %13 = arith.divf %11, %12 : vector<32x1xf32>
    %cst_8 = arith.constant 9.99999974E-6 : f32
    %14 = vector.broadcast %cst_8 : f32 to vector<32x1xf32>
    %15 = arith.addf %13, %14 : vector<32x1xf32>
    %16 = math.rsqrt %15 : vector<32x1xf32>
    %17 = vector.broadcast %16 : vector<32x1xf32> to vector<32x32xf32>
    %18 = arith.mulf %8, %17 : vector<32x32xf32>
    %19 = vector.broadcast %1 : vector<1x32xf32> to vector<32x32xf32>
    %20 = arith.mulf %18, %19 : vector<32x32xf32>
    %21 = vector.broadcast %2 : vector<1x32xf32> to vector<32x32xf32>
    %22 = arith.addf %20, %21 : vector<32x32xf32>
    %23 = arith.truncf %22 : vector<32x32xf32> to vector<32x32xbf16>
    %c0_9 = arith.constant 0 : index
    %c0_10 = arith.constant 0 : index
    %24 = vector.load %arg4[%c0_9, %c0_10] : memref<32x32xbf16, #tpu.memory_space<vmem>>, vector<32x32xbf16>
    %cst_11 = arith.constant dense<0.000000e+00> : vector<32x32xf32>
    %25 = tpu.matmul %23, %24, %cst_11 {dimension_numbers = #tpu.dot_dimension_numbers<[1], [0], [0], [1], [0, 0, 1, 1], [], []>} : vector<32x32xbf16>, vector<32x32xbf16>, vector<32x32xf32> -> vector<32x32xf32>
    %c0_12 = arith.constant 0 : index
    %c0_13 = arith.constant 0 : index
    %26 = vector.load %arg5[%c0_12, %c0_13] : memref<1x32xf32, #tpu.memory_space<vmem>>, vector<1x32xf32>
    %27 = vector.broadcast %26 : vector<1x32xf32> to vector<32x32xf32>
    %28 = arith.addf %25, %27 : vector<32x32xf32>
    %c0_14 = arith.constant 0 : index
    %c0_15 = arith.constant 0 : index
    %29 = vector.load %arg6[%c0_14, %c0_15] : memref<32x32xf32, #tpu.memory_space<vmem>>, vector<32x32xf32>
    %30 = arith.addf %28, %29 : vector<32x32xf32>
    %c0_16 = arith.constant 0 : index
    %c0_17 = arith.constant 0 : index
    %31 = vector.load %arg7[%c0_16, %c0_17] : memref<32x32xf32, #tpu.memory_space<vmem>>, vector<32x32xf32>
    tpu.vector_store %arg7[%c0_16, %c0_17], %30 {strides = array<i32>} : memref<32x32xf32, #tpu.memory_space<vmem>>, vector<32x32xf32>,
    return
  }
  func.func @transform_0(%arg0: i32) -> (i32, i32) {
    %c0_i32 = arith.constant 0 : i32
    %c0_i32_0 = arith.constant 0 : i32
    return %arg0, %c0_i32 : i32, i32
  }
  func.func @transform_1(%arg0: i32) -> (i32, i32) {
    %c0_i32 = arith.constant 0 : i32
    %c0_i32_0 = arith.constant 0 : i32
    %c0_i32_1 = arith.constant 0 : i32
    return %c0_i32, %c0_i32_0 : i32, i32
  }
  func.func @transform_2(%arg0: i32) -> (i32, i32) {
    %c0_i32 = arith.constant 0 : i32
    %c0_i32_0 = arith.constant 0 : i32
    %c0_i32_1 = arith.constant 0 : i32
    return %c0_i32, %c0_i32_0 : i32, i32
  }
  func.func @transform_3(%arg0: i32) -> (i32, i32) {
    %c0_i32 = arith.constant 0 : i32
    %c0_i32_0 = arith.constant 0 : i32
    %c0_i32_1 = arith.constant 0 : i32
    return %c0_i32, %c0_i32_0 : i32, i32
  }
  func.func @transform_4(%arg0: i32) -> (i32, i32) {
    %c0_i32 = arith.constant 0 : i32
    %c0_i32_0 = arith.constant 0 : i32
    %c0_i32_1 = arith.constant 0 : i32
    return %c0_i32, %c0_i32_0 : i32, i32
  }
  func.func @transform_5(%arg0: i32) -> (i32, i32) {
    %c0_i32 = arith.constant 0 : i32
    %c0_i32_0 = arith.constant 0 : i32
    return %arg0, %c0_i32 : i32, i32
  }
  func.func @transform_6(%arg0: i32) -> (i32, i32) {
    %c0_i32 = arith.constant 0 : i32
    %c0_i32_0 = arith.constant 0 : i32
    return %arg0, %c0_i32 : i32, i32
  }
}

</mosaic_0001>

<llo_original>
// kernel: mul.15
$region0: #{mul.15}
  #allocation2 [shape = 's32[1]{0}', space=sflag, size = 0x4, scoped, tag = 'scoped memory for mul.15']
  %s0 = inlined_call_operand.vmem [shape: f32[2,2,16,16], index: 0, kind: input, shape index: {}]
  %s1 = inlined_call_operand.hbm [shape: f32[2,2,16,16], index: 1, kind: input, shape index: {}]
  %s2 = inlined_call_operand.vmem [shape: f32[2,2,16,16], index: 2, kind: output, shape index: {}]
  $region1: #{mul.15} parent=0
    #allocation0 [shape = 'u8[32768]{0}', space=vmem, size = 0x8000, scoped, tag = 'operand span for operand 1']
    #allocation1 [shape = 's32[1]{0}', space=sflag, size = 0x4, scoped, tag = 'scoped memory for mul.15']
    %3 = vsyncpa [#allocation1], 0
    %s5 = ssub.s32 1024, 1024
    %6 = vsyncadd [#allocation1], %s5
    %s7 = sshll.u32 [#allocation0], 4
    %s8 = int_to_ptr.vmem [resolvable:$true] %s7
    %13 = dma.hbm_to_vmem [thread:$0]  %s1, 1024, %s8, [#allocation1], 128, 128, 8
    %14 = dma.done [#allocation1], 1024
    %v15 = vld [vmem:[%s0] sm:$0xff]
    %v16 = vld [vmem:[#allocation0] sm:$0xff]
    %17 = xla_tuple %v15, %v16
    %18 = xla_tuple %17
    %v19 = vmul.f32 %v15, %v16
    %20 = xla_tuple %v19
    %21 = vst [vmem:[%s2] sm:$0xff] %v19
    %s22 = scalar_lea.vmem %s0, 32
    %v23 = vld [vmem:[%s22] sm:$0xff]
    %s24 = scalar_lea.vmem [#allocation0], 32
    %v25 = vld [vmem:[%s24] sm:$0xff]
    %26 = xla_tuple %v23, %v25
    %27 = xla_tuple %26
    %v28 = vmul.f32 %v23, %v25
    %29 = xla_tuple %v28
    %s30 = scalar_lea.vmem %s2, 32
    %31 = vst [vmem:[%s30] sm:$0xff] %v28
    %s32 = scalar_lea.vmem %s0, 16
    %v33 = vld [vmem:[%s32] sm:$0xff]
    %s34 = scalar_lea.vmem [#allocation0], 16
    %v35 = vld [vmem:[%s34] sm:$0xff]
    %36 = xla_tuple %v33, %v35
    %37 = xla_tuple %36
    %v38 = vmul.f32 %v33, %v35
    %39 = xla_tuple %v38
    %s40 = scalar_lea.vmem %s2, 16
    %41 = vst [vmem:[%s40] sm:$0xff] %v38
    %s42 = scalar_lea.vmem %s0, 48
    %v43 = vld [vmem:[%s42] sm:$0xff]
    %s44 = scalar_lea.vmem [#allocation0], 48
    %v45 = vld [vmem:[%s44] sm:$0xff]
    %46 = xla_tuple %v43, %v45
    %47 = xla_tuple %46
    %v48 = vmul.f32 %v43, %v45
    %49 = xla_tuple %v48
    %s50 = scalar_lea.vmem %s2, 48
    %51 = vst [vmem:[%s50] sm:$0xff] %v48
    %s52 = scalar_lea.vmem %s0, 8
    %v53 = vld [vmem:[%s52] sm:$0xff]
    %s54 = scalar_lea.vmem [#allocation0], 8
    %v55 = vld [vmem:[%s54] sm:$0xff]
    %56 = xla_tuple %v53, %v55
    %57 = xla_tuple %56
    %v58 = vmul.f32 %v53, %v55
    %59 = xla_tuple %v58
    %s60 = scalar_lea.vmem %s2, 8
    %61 = vst [vmem:[%s60] sm:$0xff] %v58
    %s62 = scalar_lea.vmem %s0, 40
    %v63 = vld [vmem:[%s62] sm:$0xff]
    %s64 = scalar_lea.vmem [#allocation0], 40
    %v65 = vld [vmem:[%s64] sm:$0xff]
    %66 = xla_tuple %v63, %v65
    %67 = xla_tuple %66
    %v68 = vmul.f32 %v63, %v65
    %69 = xla_tuple %v68
    %s70 = scalar_lea.vmem %s2, 40
    %71 = vst [vmem:[%s70] sm:$0xff] %v68
    %s72 = scalar_lea.vmem %s0, 24
    %v73 = vld [vmem:[%s72] sm:$0xff]
    %s74 = scalar_lea.vmem [#allocation0], 24
    %v75 = vld [vmem:[%s74] sm:$0xff]
    %76 = xla_tuple %v73, %v75
    %77 = xla_tuple %76
    %v78 = vmul.f32 %v73, %v75
    %79 = xla_tuple %v78
    %s80 = scalar_lea.vmem %s2, 24
    %81 = vst [vmem:[%s80] sm:$0xff] %v78
    %s82 = scalar_lea.vmem %s0, 56
    %v83 = vld [vmem:[%s82] sm:$0xff]
    %s84 = scalar_lea.vmem [#allocation0], 56
    %v85 = vld [vmem:[%s84] sm:$0xff]
    %86 = xla_tuple %v83, %v85
    %87 = xla_tuple %86
    %v88 = vmul.f32 %v83, %v85
    %89 = xla_tuple %v88
    %s90 = scalar_lea.vmem %s2, 56
    %91 = vst [vmem:[%s90] sm:$0xff] %v88
    %92 = vsyncpa [#allocation1], 1

// kernel: vit_forward_pallas.4
$region0: #{vit_forward_pallas.4}
  #allocation0 [shape = 'u32[]', space=smem, size = 0x4, offset = 0x4, fixed_abs, tag = 'smem constant byte address 0x4 - core index']
  #allocation1 [shape = 'u32[144,128]{1,0:T(1,128)}', space=vmem, size = 0x12000, scoped, tag = 'internal scratch']
  %s0 = inlined_call_operand.vmem [shape: f32[2,16,64], index: 0, kind: input, shape index: {}]
  %s1 = inlined_call_operand.vmem [shape: bf16[64,32], index: 1, kind: input, shape index: {}]
  %s2 = inlined_call_operand.vmem [shape: f32[1,32], index: 2, kind: input, shape index: {}]
  %s3 = inlined_call_operand.vmem [shape: f32[1,16,32], index: 3, kind: input, shape index: {}]
  %s4 = inlined_call_operand.vmem [shape: f32[2,16,32], index: 4, kind: output, shape index: {}]
  %s5 = sld [smem:[#allocation0]]
  $region49: #{vit_forward_pallas.4} parent=0
    _
  %s7 = ssub.s32 1, %s5
  %s8 = scalar_select 0, %s7, %s5
  loop: start=0, step=1, limit=4
  $region2: #{vit_forward_pallas.4} parent=0 // loop_pre_header
    _
  $region3: #{vit_forward_pallas.4} parent=0 // loop_header
    %s10 = sphi 0, %s14
    %p11 = scmp.ge.s32.totalorder %s10, 4
    %s20 = sphi 0, %s22
    %s23 = sphi 0, %s20
    %s24 = sphi 0, %s23
    %s40 = sphi 0, %s24
    %s44 = sphi 0, %s44
    %s46 = sphi 0, %s44
    %s47 = sphi 0, %s46
    %s61 = sphi 0, %s47
    %s65 = sphi 0, %s65
    %s67 = sphi 0, %s65
    %s68 = sphi 0, %s67
    %s82 = sphi 0, %s68
    %s86 = sphi 0, %s86
    %s88 = sphi 0, %s86
    %s89 = sphi 0, %s88
    %s103 = sphi 0, %s89
    %s109 = sphi 0, %s111
    %s112 = sphi 0, %s109
    %s113 = sphi 0, %s112
    %s129 = sphi 0, %s113
  $region4: #{vit_forward_pallas.4} parent=0 // loop_header_branch
    %13 = sbr.rel (%p11) target = $region8
  $region5: #{vit_forward_pallas.4} parent=0 // loop_body
    %s15 = ssub.s32 %s10, 1
    %s16 = ssub.s32 %s10, 2
    %s17 = sadd.s32 %s10, 1
    %s18 = ssub.s32 %s10, %s17
    %p19 = scmp.eq.s32.totalorder %s18, 0
    %s21 = sadd.s32 %s20, 1
    %s22 = scalar_select %p19, %s20, %s21
    %p25 = pneg %p19
    %p26 = scmp.eq.s32.totalorder %s10, 1
    %p27 = por %p25, %p26
    %p28 = scmp.ne.s32.totalorder %s20, %s23
    %p29 = scmp.eq.s32.totalorder %s10, 0
    %p30 = por %p28, %p29
    %p31 = scmp.ne.s32.totalorder %s20, %s23
    %p32 = scmp.eq.s32.totalorder %s15, 1
    %p33 = por %p31, %p32
    %p34 = scmp.ne.s32.totalorder %s23, %s24
    %p35 = scmp.eq.s32.totalorder %s15, 0
    %p36 = por %p34, %p35
    %p37 = scmp.ne.s32.totalorder %s23, %s24
    %p38 = scmp.eq.s32.totalorder %s16, 1
    %p39 = por %p37, %p38
    %p41 = scmp.ne.s32.totalorder %s24, %s40
    %p42 = scmp.eq.s32.totalorder %s16, 0
    %p43 = por %p41, %p42
    %s45 = sadd.s32 %s44, 1
    %p48 = scmp.eq.s32.totalorder %s10, 1
    %p49 = scmp.ne.s32.totalorder %s44, %s46
    %p50 = scmp.eq.s32.totalorder %s10, 0
    %p51 = por %p49, %p50
    %p52 = scmp.ne.s32.totalorder %s44, %s46
    %p53 = scmp.eq.s32.totalorder %s15, 1
    %p54 = por %p52, %p53
    %p55 = scmp.ne.s32.totalorder %s46, %s47
    %p56 = scmp.eq.s32.totalorder %s15, 0
    %p57 = por %p55, %p56
    %p58 = scmp.ne.s32.totalorder %s46, %s47
    %p59 = scmp.eq.s32.totalorder %s16, 1
    %p60 = por %p58, %p59
    %p62 = scmp.ne.s32.totalorder %s47, %s61
    %p63 = scmp.eq.s32.totalorder %s16, 0
    %p64 = por %p62, %p63
    %s66 = sadd.s32 %s65, 1
    %p69 = scmp.eq.s32.totalorder %s10, 1
    %p70 = scmp.ne.s32.totalorder %s65, %s67
    %p71 = scmp.eq.s32.totalorder %s10, 0
    %p72 = por %p70, %p71
    %p73 = scmp.ne.s32.totalorder %s65, %s67
    %p74 = scmp.eq.s32.totalorder %s15, 1
    %p75 = por %p73, %p74
    %p76 = scmp.ne.s32.totalorder %s67, %s68
    %p77 = scmp.eq.s32.totalorder %s15, 0
    %p78 = por %p76, %p77
    %p79 = scmp.ne.s32.totalorder %s67, %s68
    %p80 = scmp.eq.s32.totalorder %s16, 1
    %p81 = por %p79, %p80
    %p83 = scmp.ne.s32.totalorder %s68, %s82
    %p84 = scmp.eq.s32.totalorder %s16, 0
    %p85 = por %p83, %p84
    %s87 = sadd.s32 %s86, 1
    %p90 = scmp.eq.s32.totalorder %s10, 1
    %p91 = scmp.ne.s32.totalorder %s86, %s88
    %p92 = scmp.eq.s32.totalorder %s10, 0
    %p93 = por %p91, %p92
    %p94 = scmp.ne.s32.totalorder %s86, %s88
    %p95 = scmp.eq.s32.totalorder %s15, 1
    %p96 = por %p94, %p95
    %p97 = scmp.ne.s32.totalorder %s88, %s89
    %p98 = scmp.eq.s32.totalorder %s15, 0
    %p99 = por %p97, %p98
    %p100 = scmp.ne.s32.totalorder %s88, %s89
    %p101 = scmp.eq.s32.totalorder %s16, 1
    %p102 = por %p100, %p101
    %p104 = scmp.ne.s32.totalorder %s89, %s103
    %p105 = scmp.eq.s32.totalorder %s16, 0
    %p106 = por %p104, %p105
    %s107 = ssub.s32 %s10, %s17
    %p108 = scmp.eq.s32.totalorder %s107, 0
    %s110 = sadd.s32 %s109, 1
    %s111 = scalar_select %p108, %s109, %s110
    %p114 = pneg %p108
    %p115 = scmp.eq.s32.totalorder %s10, 1
    %p116 = por %p114, %p115
    %p117 = scmp.ne.s32.totalorder %s109, %s112
    %p118 = scmp.eq.s32.totalorder %s10, 0
    %p119 = por %p117, %p118
    %p120 = scmp.ne.s32.totalorder %s109, %s112
    %p121 = scmp.eq.s32.totalorder %s15, 1
    %p122 = por %p120, %p121
    %p123 = scmp.ne.s32.totalorder %s112, %s113
    %p124 = scmp.eq.s32.totalorder %s15, 0
    %p125 = por %p123, %p124
    %p126 = scmp.ne.s32.totalorder %s112, %s113
    %p127 = scmp.eq.s32.totalorder %s16, 1
    %p128 = por %p126, %p127
    %p130 = scmp.ne.s32.totalorder %s113, %s129
    %p131 = scmp.eq.s32.totalorder %s16, 0
    %p132 = por %p130, %p131
    %p133 = scmp.le.s32.totalorder 1, %s10
    %p134 = scmp.lt.s32.totalorder %s10, 3
    %p135 = pnand %p133, %p134
    %p136 = pneg %p135
    // Predicated region
    $region9: #{vit_forward_pallas.4} parent=5 // pred_check
      _
    $region10: #{vit_forward_pallas.4} parent=5 // pred_check_branch
      %138 = sbr.rel (%p135) target = $region12
    $region11: #{vit_forward_pallas.4} parent=5 // pred_region
      %s139 = ssub.s32 %s10, 1
      // Predicated region
      $region13: #{vit_forward_pallas.4} parent=11 // pred_check
        %p140 = pneg %p57
      $region14: #{vit_forward_pallas.4} parent=11 // pred_check_branch
        %142 = sbr.rel (%p140) target = $region16
      $region15: #{vit_forward_pallas.4} parent=11 // pred_region
        _
      $region16: #{vit_forward_pallas.4} parent=11 // pred_fallthru
        _
      // Predicated region
      $region17: #{vit_forward_pallas.4} parent=11 // pred_check
        %p143 = pneg %p78
      $region18: #{vit_forward_pallas.4} parent=11 // pred_check_branch
        %145 = sbr.rel (%p143) target = $region20
      $region19: #{vit_forward_pallas.4} parent=11 // pred_region
        _
      $region20: #{vit_forward_pallas.4} parent=11 // pred_fallthru
        _
      // Predicated region
      $region21: #{vit_forward_pallas.4} parent=11 // pred_check
        %p146 = pneg %p99
      $region22: #{vit_forward_pallas.4} parent=11 // pred_check_branch
        %148 = sbr.rel (%p146) target = $region24
      $region23: #{vit_forward_pallas.4} parent=11 // pred_region
        _
      $region24: #{vit_forward_pallas.4} parent=11 // pred_fallthru
        _
    $region12: #{vit_forward_pallas.4} parent=5 // pred_fallthru
      _
    %p149 = scmp.lt.s32.totalorder %s10, 2
    // Predicated region
    $region25: #{vit_forward_pallas.4} parent=5 // pred_check
      %p150 = pneg %p149
    $region26: #{vit_forward_pallas.4} parent=5 // pred_check_branch
      %152 = sbr.rel (%p150) target = $region28
    $region27: #{vit_forward_pallas.4} parent=5 // pred_region
      // Predicated region
      $region29: #{vit_forward_pallas.4} parent=27 // pred_check
        %p153 = pneg %p30
      $region30: #{vit_forward_pallas.4} parent=27 // pred_check_branch
        %155 = sbr.rel (%p153) target = $region32
      $region31: #{vit_forward_pallas.4} parent=27 // pred_region
        %p156 = scmp.lt.s32.totalorder %s10, 1
        %s157 = scalar_select %p156, %s10, 1
        %s158 = smul.addr %s157, 2
        %s159 = smul.addr %s158, 8
        %s160 = scalar_lea.vmem %s0, %s159
      $region32: #{vit_forward_pallas.4} parent=27 // pred_fallthru
        _
    $region28: #{vit_forward_pallas.4} parent=5 // pred_fallthru
      _
    %p161 = scmp.le.s32.totalorder 1, %s10
    %p162 = scmp.lt.s32.totalorder %s10, 3
    %p163 = pnand %p161, %p162
    %p164 = pneg %p163
    // Predicated region
    $region33: #{vit_forward_pallas.4} parent=5 // pred_check
      _
    $region34: #{vit_forward_pallas.4} parent=5 // pred_check_branch
      %166 = sbr.rel (%p163) target = $region36
    $region35: #{vit_forward_pallas.4} parent=5 // pred_region
      %s167 = ssub.s32 %s10, 1
      %p168 = scmp.lt.s32.totalorder %s15, 1
      %s169 = scalar_select %p168, %s15, 1
      %s170 = smul.addr %s169, 2
      %s171 = smul.addr %s170, 8
      %s172 = scalar_lea.vmem %s0, %s171
      %p173 = pneg %p36
      %p174 = pneg %p33
      %p175 = pneg %p57
      %p176 = pneg %p54
      %p177 = pneg %p78
      %p178 = pneg %p75
      %p179 = pneg %p99
      %p180 = pneg %p96
      %p181 = pneg %p125
      %p182 = pneg %p122
      %p183 = scmp.lt.s32.totalorder %s15, 1
      %s184 = scalar_select %p183, %s15, 1
      %s185 = smul.addr %s184, 2
      %s186 = smul.addr %s185, 8
      %s187 = scalar_lea.vmem %s4, %s186
      %p188 = scmp.lt.s32.totalorder %s15, 1
      %s189 = scalar_select %p188, %s15, 1
      %s190 = smul.addr %s189, 2
      %s191 = smul.addr %s190, 8
      %s192 = scalar_lea.vmem %s0, %s191
      %p193 = scmp.lt.s32.totalorder %s15, 1
      %s194 = scalar_select %p193, %s15, 1
      %s195 = smul.addr %s194, 2
      %s196 = smul.addr %s195, 8
      %s197 = scalar_lea.vmem %s4, %s196
      %v199 = vld [vmem:[%s192] sm:$0xff]
      %v200 = vld [vmem:[%s192 + $0x8] sm:$0xff]
      %v201 = vpack.c.bf16 %v200, %v199
      %v202 = vld [vmem:[%s1] sm:$0xf]
      %v203 = vld [vmem:[%s1 + $0x4] sm:$0xf]
      %v204 = vld [vmem:[%s1 + $0x8] sm:$0xf]
      %v205 = vld [vmem:[%s1 + $0xc] sm:$0xf]
      %v206 = vld [vmem:[%s1 + $0x10] sm:$0xf]
      %v207 = vld [vmem:[%s1 + $0x14] sm:$0xf]
      %v208 = vld [vmem:[%s1 + $0x18] sm:$0xf]
      %v209 = vld [vmem:[%s1 + $0x1c] sm:$0xf]
      %v210 = vld [vmem:[%s2] sm:$0x1]
      %v212 = vlaneseq
      %v213 = vshrl.u32 %v212, 7
      %v214 = vsub.s32 0, %v213
      %v215 = vrot.slane %v210, %v214
      %v225 = vunpack.c.l.b16 %v202
      %v226 = vunpack.c.l.b16 %v203
      %v227 = vunpack.c.l.b16 %v204
      %v228 = vunpack.c.l.b16 %v205
      %v229 = vunpack.c.l.b16 %v206
      %v230 = vunpack.c.l.b16 %v207
      %v231 = vunpack.c.l.b16 %v208
      %v232 = vunpack.c.l.b16 %v209
      %v233 = vpack.c.b16 %v226, %v225
      %v234 = vpack.c.b16 %v228, %v227
      %v235 = vpack.c.b16 %v230, %v229
      %v236 = vpack.c.b16 %v232, %v231
      %vm241 = vcmask 523264
      %v243 = vsel %vm241, %v201, 0
      %245 = vmatprep.subr.bf16.mxu0 0
      %246 = vmatpush1.bf16.msra.mxu0 %v233
      %247 = vmatprep.subr.bf16.mxu0 0
      %248 = vmatpush1.bf16.msra.mxu0 %v234
      %249 = vmatprep.subr.bf16.mxu0 0
      %250 = vmatpush1.bf16.msra.mxu0 %v235
      %251 = vmatprep.subr.bf16.mxu0 0
      %252 = vmatpush1.bf16.msra.mxu0 %v236
      %253 = vmatprep.subr.bf16.mxu0 0
      %254 = vmatpush1.bf16.msra.mxu0 0
      %255 = vmatprep.subr.bf16.mxu0 0
      %256 = vmatpush1.bf16.msra.mxu0 0
      %257 = vmatprep.subr.bf16.mxu0 0
      %258 = vmatpush1.bf16.msra.mxu0 0
      %259 = vmatprep.subr.bf16.mxu0 0
      %260 = vmatpush1.bf16.msra.mxu0 0
      %261 = vmatprep.subr.bf16.mxu0 0
      %262 = vmatpush1.bf16.msra.mxu0 0
      %263 = vmatprep.subr.bf16.mxu0 0
      %264 = vmatpush1.bf16.msra.mxu0 0
      %265 = vmatprep.subr.bf16.mxu0 0
      %266 = vmatpush1.bf16.msra.mxu0 0
      %267 = vmatprep.subr.bf16.mxu0 0
      %268 = vmatpush1.bf16.msra.mxu0 0
      %269 = vmatprep.subr.bf16.mxu0 0
      %270 = vmatpush1.bf16.msra.mxu0 0
      %271 = vmatprep.subr.bf16.mxu0 0
      %272 = vmatpush1.bf16.msra.mxu0 0
      %273 = vmatprep.subr.bf16.mxu0 0
      %274 = vmatpush1.bf16.msra.mxu0 0
      %275 = vmatprep.subr.bf16.mxu0 0
      %276 = vmatpush1.bf16.msra.mxu0 0
      %277 = vmatprep.mubr.bf16.mxu0 0
      %278 = vmatmul.mubr.bf16.gmra.mrb[0].mxu0 %v243
      %v279 = vpop.f32.mrb[0].mxu0
      %v280 = vadd.f32 %v215, %v279
      %v281 = vpop.f32.mrb[0].mxu0
      %v282 = vpop.f32.mrb[0].mxu0
      %v283 = vadd.f32 %v215, %v282
      %v284 = vpop.f32.mrb[0].mxu0
      %285 = vdwg.mxu0
      %v286 = vld [vmem:[%s3] sm:$0xff]
      %v287 = vld [vmem:[%s3 + $0x8] sm:$0xff]
      %v288 = vadd.f32 %v280, %v286
      %v289 = vadd.f32 %v283, %v287
      %vm290 = vcmask 261120
      %291 = vst.msk [vmem:[%s197] sm:$0xff] %vm290, %v288
      %292 = vst.msk [vmem:[%s197 + $0x8] sm:$0xff] %vm290, %v289
      %p293 = scmp.lt.s32.totalorder %s15, 1
      %s294 = scalar_select %p293, %s15, 1
      %s295 = smul.addr %s294, 2
      %s296 = smul.addr %s295, 8
      %s297 = scalar_lea.vmem %s4, %s296
      // Predicated region
      $region37: #{vit_forward_pallas.4} parent=35 // pred_check
        %p298 = pneg %p122
      $region38: #{vit_forward_pallas.4} parent=35 // pred_check_branch
        %300 = sbr.rel (%p298) target = $region40
      $region39: #{vit_forward_pallas.4} parent=35 // pred_region
        _
      $region40: #{vit_forward_pallas.4} parent=35 // pred_fallthru
        _
    $region36: #{vit_forward_pallas.4} parent=5 // pred_fallthru
      _
    %p301 = scmp.le.s32.totalorder 2, %s10
    // Predicated region
    $region41: #{vit_forward_pallas.4} parent=5 // pred_check
      %p302 = pneg %p301
    $region42: #{vit_forward_pallas.4} parent=5 // pred_check_branch
      %304 = sbr.rel (%p302) target = $region44
    $region43: #{vit_forward_pallas.4} parent=5 // pred_region
      %s305 = ssub.s32 %s10, 2
      // Predicated region
      $region45: #{vit_forward_pallas.4} parent=43 // pred_check
        %p306 = pneg %p128
      $region46: #{vit_forward_pallas.4} parent=43 // pred_check_branch
        %308 = sbr.rel (%p306) target = $region48
      $region47: #{vit_forward_pallas.4} parent=43 // pred_region
        %p309 = scmp.lt.s32.totalorder %s16, 1
        %s310 = scalar_select %p309, %s16, 1
        %s311 = smul.addr %s310, 2
        %s312 = smul.addr %s311, 8
        %s313 = scalar_lea.vmem %s4, %s312
      $region48: #{vit_forward_pallas.4} parent=43 // pred_fallthru
        _
    $region44: #{vit_forward_pallas.4} parent=5 // pred_fallthru
      _
  $region6: #{vit_forward_pallas.4} parent=0 // loop_footer
    %s14 = sadd.s32 1, %s10
  $region7: #{vit_forward_pallas.4} parent=0 // loop_footer_branch
    %9 = sbr.rel target = $region3
  $region8: #{vit_forward_pallas.4} parent=0 // loop_exit
    _

// kernel: vit_forward_pallas.5
$region0: #{vit_forward_pallas.5}
  #allocation0 [shape = 'u32[]', space=smem, size = 0x4, offset = 0x4, fixed_abs, tag = 'smem constant byte address 0x4 - core index']
  #allocation1 [shape = 'u32[144,128]{1,0:T(1,128)}', space=vmem, size = 0x12000, scoped, tag = 'internal scratch']
  #allocation2 [shape = 'f32[16,32]{1,0:T(8,128)}', space=vmem, size = 0x2000, scoped, tag = 'scratch operand']
  %s0 = inlined_call_operand.vmem [shape: f32[2,16,32], index: 0, kind: input, shape index: {}]
  %s1 = inlined_call_operand.vmem [shape: f32[1,32], index: 1, kind: input, shape index: {}]
  %s2 = inlined_call_operand.vmem [shape: f32[1,32], index: 2, kind: input, shape index: {}]
  %s3 = inlined_call_operand.vmem [shape: bf16[32,96], index: 3, kind: input, shape index: {}]
  %s4 = inlined_call_operand.vmem [shape: bf16[32,32], index: 4, kind: input, shape index: {}]
  %s5 = inlined_call_operand.vmem [shape: f32[1,32], index: 5, kind: input, shape index: {}]
  %s6 = inlined_call_operand.vmem [shape: f32[1,32], index: 6, kind: input, shape index: {}]
  %s7 = inlined_call_operand.vmem [shape: f32[1,32], index: 7, kind: input, shape index: {}]
  %s8 = inlined_call_operand.vmem [shape: bf16[32,64], index: 8, kind: input, shape index: {}]
  %s9 = inlined_call_operand.vmem [shape: f32[1,64], index: 9, kind: input, shape index: {}]
  %s10 = inlined_call_operand.vmem [shape: bf16[64,32], index: 10, kind: input, shape index: {}]
  %s11 = inlined_call_operand.vmem [shape: f32[1,32], index: 11, kind: input, shape index: {}]
  %s12 = inlined_call_operand.vmem [shape: f32[2,16,32], index: 12, kind: output, shape index: {}]
  %s13 = sld [smem:[#allocation0]]
  $region81: #{vit_forward_pallas.5} parent=0
    _
  %s15 = ssub.s32 1, %s13
  %s16 = scalar_select 0, %s15, %s13
  loop: start=0, step=1, limit=4
  $region2: #{vit_forward_pallas.5} parent=0 // loop_pre_header
    _
  $region3: #{vit_forward_pallas.5} parent=0 // loop_header
    %s18 = sphi 0, %s22
    %p19 = scmp.ge.s32.totalorder %s18, 4
    %s28 = sphi 0, %s30
    %s31 = sphi 0, %s28
    %s32 = sphi 0, %s31
    %s48 = sphi 0, %s32
    %s52 = sphi 0, %s52
    %s54 = sphi 0, %s52
    %s55 = sphi 0, %s54
    %s69 = sphi 0, %s55
    %s73 = sphi 0, %s73
    %s75 = sphi 0, %s73
    %s76 = sphi 0, %s75
    %s90 = sphi 0, %s76
    %s94 = sphi 0, %s94
    %s96 = sphi 0, %s94
    %s97 = sphi 0, %s96
    %s111 = sphi 0, %s97
    %s115 = sphi 0, %s115
    %s117 = sphi 0, %s115
    %s118 = sphi 0, %s117
    %s132 = sphi 0, %s118
    %s136 = sphi 0, %s136
    %s138 = sphi 0, %s136
    %s139 = sphi 0, %s138
    %s153 = sphi 0, %s139
    %s157 = sphi 0, %s157
    %s159 = sphi 0, %s157
    %s160 = sphi 0, %s159
    %s174 = sphi 0, %s160
    %s178 = sphi 0, %s178
    %s180 = sphi 0, %s178
    %s181 = sphi 0, %s180
    %s195 = sphi 0, %s181
    %s199 = sphi 0, %s199
    %s201 = sphi 0, %s199
    %s202 = sphi 0, %s201
    %s216 = sphi 0, %s202
    %s220 = sphi 0, %s220
    %s222 = sphi 0, %s220
    %s223 = sphi 0, %s222
    %s237 = sphi 0, %s223
    %s241 = sphi 0, %s241
    %s243 = sphi 0, %s241
    %s244 = sphi 0, %s243
    %s258 = sphi 0, %s244
    %s262 = sphi 0, %s262
    %s264 = sphi 0, %s262
    %s265 = sphi 0, %s264
    %s279 = sphi 0, %s265
    %s285 = sphi 0, %s287
    %s288 = sphi 0, %s285
    %s289 = sphi 0, %s288
    %s305 = sphi 0, %s289
  $region4: #{vit_forward_pallas.5} parent=0 // loop_header_branch
    %21 = sbr.rel (%p19) target = $region8
  $region5: #{vit_forward_pallas.5} parent=0 // loop_body
    %s23 = ssub.s32 %s18, 1
    %s24 = ssub.s32 %s18, 2
    %s25 = sadd.s32 %s18, 1
    %s26 = ssub.s32 %s18, %s25
    %p27 = scmp.eq.s32.totalorder %s26, 0
    %s29 = sadd.s32 %s28, 1
    %s30 = scalar_select %p27, %s28, %s29
    %p33 = pneg %p27
    %p34 = scmp.eq.s32.totalorder %s18, 1
    %p35 = por %p33, %p34
    %p36 = scmp.ne.s32.totalorder %s28, %s31
    %p37 = scmp.eq.s32.totalorder %s18, 0
    %p38 = por %p36, %p37
    %p39 = scmp.ne.s32.totalorder %s28, %s31
    %p40 = scmp.eq.s32.totalorder %s23, 1
    %p41 = por %p39, %p40
    %p42 = scmp.ne.s32.totalorder %s31, %s32
    %p43 = scmp.eq.s32.totalorder %s23, 0
    %p44 = por %p42, %p43
    %p45 = scmp.ne.s32.totalorder %s31, %s32
    %p46 = scmp.eq.s32.totalorder %s24, 1
    %p47 = por %p45, %p46
    %p49 = scmp.ne.s32.totalorder %s32, %s48
    %p50 = scmp.eq.s32.totalorder %s24, 0
    %p51 = por %p49, %p50
    %s53 = sadd.s32 %s52, 1
    %p56 = scmp.eq.s32.totalorder %s18, 1
    %p57 = scmp.ne.s32.totalorder %s52, %s54
    %p58 = scmp.eq.s32.totalorder %s18, 0
    %p59 = por %p57, %p58
    %p60 = scmp.ne.s32.totalorder %s52, %s54
    %p61 = scmp.eq.s32.totalorder %s23, 1
    %p62 = por %p60, %p61
    %p63 = scmp.ne.s32.totalorder %s54, %s55
    %p64 = scmp.eq.s32.totalorder %s23, 0
    %p65 = por %p63, %p64
    %p66 = scmp.ne.s32.totalorder %s54, %s55
    %p67 = scmp.eq.s32.totalorder %s24, 1
    %p68 = por %p66, %p67
    %p70 = scmp.ne.s32.totalorder %s55, %s69
    %p71 = scmp.eq.s32.totalorder %s24, 0
    %p72 = por %p70, %p71
    %s74 = sadd.s32 %s73, 1
    %p77 = scmp.eq.s32.totalorder %s18, 1
    %p78 = scmp.ne.s32.totalorder %s73, %s75
    %p79 = scmp.eq.s32.totalorder %s18, 0
    %p80 = por %p78, %p79
    %p81 = scmp.ne.s32.totalorder %s73, %s75
    %p82 = scmp.eq.s32.totalorder %s23, 1
    %p83 = por %p81, %p82
    %p84 = scmp.ne.s32.totalorder %s75, %s76
    %p85 = scmp.eq.s32.totalorder %s23, 0
    %p86 = por %p84, %p85
    %p87 = scmp.ne.s32.totalorder %s75, %s76
    %p88 = scmp.eq.s32.totalorder %s24, 1
    %p89 = por %p87, %p88
    %p91 = scmp.ne.s32.totalorder %s76, %s90
    %p92 = scmp.eq.s32.totalorder %s24, 0
    %p93 = por %p91, %p92
    %s95 = sadd.s32 %s94, 1
    %p98 = scmp.eq.s32.totalorder %s18, 1
    %p99 = scmp.ne.s32.totalorder %s94, %s96
    %p100 = scmp.eq.s32.totalorder %s18, 0
    %p101 = por %p99, %p100
    %p102 = scmp.ne.s32.totalorder %s94, %s96
    %p103 = scmp.eq.s32.totalorder %s23, 1
    %p104 = por %p102, %p103
    %p105 = scmp.ne.s32.totalorder %s96, %s97
    %p106 = scmp.eq.s32.totalorder %s23, 0
    %p107 = por %p105, %p106
    %p108 = scmp.ne.s32.totalorder %s96, %s97
    %p109 = scmp.eq.s32.totalorder %s24, 1
    %p110 = por %p108, %p109
    %p112 = scmp.ne.s32.totalorder %s97, %s111
    %p113 = scmp.eq.s32.totalorder %s24, 0
    %p114 = por %p112, %p113
    %s116 = sadd.s32 %s115, 1
    %p119 = scmp.eq.s32.totalorder %s18, 1
    %p120 = scmp.ne.s32.totalorder %s115, %s117
    %p121 = scmp.eq.s32.totalorder %s18, 0
    %p122 = por %p120, %p121
    %p123 = scmp.ne.s32.totalorder %s115, %s117
    %p124 = scmp.eq.s32.totalorder %s23, 1
    %p125 = por %p123, %p124
    %p126 = scmp.ne.s32.totalorder %s117, %s118
    %p127 = scmp.eq.s32.totalorder %s23, 0
    %p128 = por %p126, %p127
    %p129 = scmp.ne.s32.totalorder %s117, %s118
    %p130 = scmp.eq.s32.totalorder %s24, 1
    %p131 = por %p129, %p130
    %p133 = scmp.ne.s32.totalorder %s118, %s132
    %p134 = scmp.eq.s32.totalorder %s24, 0
    %p135 = por %p133, %p134
    %s137 = sadd.s32 %s136, 1
    %p140 = scmp.eq.s32.totalorder %s18, 1
    %p141 = scmp.ne.s32.totalorder %s136, %s138
    %p142 = scmp.eq.s32.totalorder %s18, 0
    %p143 = por %p141, %p142
    %p144 = scmp.ne.s32.totalorder %s136, %s138
    %p145 = scmp.eq.s32.totalorder %s23, 1
    %p146 = por %p144, %p145
    %p147 = scmp.ne.s32.totalorder %s138, %s139
    %p148 = scmp.eq.s32.totalorder %s23, 0
    %p149 = por %p147, %p148
    %p150 = scmp.ne.s32.totalorder %s138, %s139
    %p151 = scmp.eq.s32.totalorder %s24, 1
    %p152 = por %p150, %p151
    %p154 = scmp.ne.s32.totalorder %s139, %s153
    %p155 = scmp.eq.s32.totalorder %s24, 0
    %p156 = por %p154, %p155
    %s158 = sadd.s32 %s157, 1
    %p161 = scmp.eq.s32.totalorder %s18, 1
    %p162 = scmp.ne.s32.totalorder %s157, %s159
    %p163 = scmp.eq.s32.totalorder %s18, 0
    %p164 = por %p162, %p163
    %p165 = scmp.ne.s32.totalorder %s157, %s159
    %p166 = scmp.eq.s32.totalorder %s23, 1
    %p167 = por %p165, %p166
    %p168 = scmp.ne.s32.totalorder %s159, %s160
    %p169 = scmp.eq.s32.totalorder %s23, 0
    %p170 = por %p168, %p169
    %p171 = scmp.ne.s32.totalorder %s159, %s160
    %p172 = scmp.eq.s32.totalorder %s24, 1
    %p173 = por %p171, %p172
    %p175 = scmp.ne.s32.totalorder %s160, %s174
    %p176 = scmp.eq.s32.totalorder %s24, 0
    %p177 = por %p175, %p176
    %s179 = sadd.s32 %s178, 1
    %p182 = scmp.eq.s32.totalorder %s18, 1
    %p183 = scmp.ne.s32.totalorder %s178, %s180
    %p184 = scmp.eq.s32.totalorder %s18, 0
    %p185 = por %p183, %p184
    %p186 = scmp.ne.s32.totalorder %s178, %s180
    %p187 = scmp.eq.s32.totalorder %s23, 1
    %p188 = por %p186, %p187
    %p189 = scmp.ne.s32.totalorder %s180, %s181
    %p190 = scmp.eq.s32.totalorder %s23, 0
    %p191 = por %p189, %p190
    %p192 = scmp.ne.s32.totalorder %s180, %s181
    %p193 = scmp.eq.s32.totalorder %s24, 1
    %p194 = por %p192, %p193
    %p196 = scmp.ne.s32.totalorder %s181, %s195
    %p197 = scmp.eq.s32.totalorder %s24, 0
    %p198 = por %p196, %p197
    %s200 = sadd.s32 %s199, 1
    %p203 = scmp.eq.s32.totalorder %s18, 1
    %p204 = scmp.ne.s32.totalorder %s199, %s201
    %p205 = scmp.eq.s32.totalorder %s18, 0
    %p206 = por %p204, %p205
    %p207 = scmp.ne.s32.totalorder %s199, %s201
    %p208 = scmp.eq.s32.totalorder %s23, 1
    %p209 = por %p207, %p208
    %p210 = scmp.ne.s32.totalorder %s201, %s202
    %p211 = scmp.eq.s32.totalorder %s23, 0
    %p212 = por %p210, %p211
    %p213 = scmp.ne.s32.totalorder %s201, %s202
    %p214 = scmp.eq.s32.totalorder %s24, 1
    %p215 = por %p213, %p214
    %p217 = scmp.ne.s32.totalorder %s202, %s216
    %p218 = scmp.eq.s32.totalorder %s24, 0
    %p219 = por %p217, %p218
    %s221 = sadd.s32 %s220, 1
    %p224 = scmp.eq.s32.totalorder %s18, 1
    %p225 = scmp.ne.s32.totalorder %s220, %s222
    %p226 = scmp.eq.s32.totalorder %s18, 0
    %p227 = por %p225, %p226
    %p228 = scmp.ne.s32.totalorder %s220, %s222
    %p229 = scmp.eq.s32.totalorder %s23, 1
    %p230 = por %p228, %p229
    %p231 = scmp.ne.s32.totalorder %s222, %s223
    %p232 = scmp.eq.s32.totalorder %s23, 0
    %p233 = por %p231, %p232
    %p234 = scmp.ne.s32.totalorder %s222, %s223
    %p235 = scmp.eq.s32.totalorder %s24, 1
    %p236 = por %p234, %p235
    %p238 = scmp.ne.s32.totalorder %s223, %s237
    %p239 = scmp.eq.s32.totalorder %s24, 0
    %p240 = por %p238, %p239
    %s242 = sadd.s32 %s241, 1
    %p245 = scmp.eq.s32.totalorder %s18, 1
    %p246 = scmp.ne.s32.totalorder %s241, %s243
    %p247 = scmp.eq.s32.totalorder %s18, 0
    %p248 = por %p246, %p247
    %p249 = scmp.ne.s32.totalorder %s241, %s243
    %p250 = scmp.eq.s32.totalorder %s23, 1
    %p251 = por %p249, %p250
    %p252 = scmp.ne.s32.totalorder %s243, %s244
    %p253 = scmp.eq.s32.totalorder %s23, 0
    %p254 = por %p252, %p253
    %p255 = scmp.ne.s32.totalorder %s243, %s244
    %p256 = scmp.eq.s32.totalorder %s24, 1
    %p257 = por %p255, %p256
    %p259 = scmp.ne.s32.totalorder %s244, %s258
    %p260 = scmp.eq.s32.totalorder %s24, 0
    %p261 = por %p259, %p260
    %s263 = sadd.s32 %s262, 1
    %p266 = scmp.eq.s32.totalorder %s18, 1
    %p267 = scmp.ne.s32.totalorder %s262, %s264
    %p268 = scmp.eq.s32.totalorder %s18, 0
    %p269 = por %p267, %p268
    %p270 = scmp.ne.s32.totalorder %s262, %s264
    %p271 = scmp.eq.s32.totalorder %s23, 1
    %p272 = por %p270, %p271
    %p273 = scmp.ne.s32.totalorder %s264, %s265
    %p274 = scmp.eq.s32.totalorder %s23, 0
    %p275 = por %p273, %p274
    %p276 = scmp.ne.s32.totalorder %s264, %s265
    %p277 = scmp.eq.s32.totalorder %s24, 1
    %p278 = por %p276, %p277
    %p280 = scmp.ne.s32.totalorder %s265, %s279
    %p281 = scmp.eq.s32.totalorder %s24, 0
    %p282 = por %p280, %p281
    %s283 = ssub.s32 %s18, %s25
    %p284 = scmp.eq.s32.totalorder %s283, 0
    %s286 = sadd.s32 %s285, 1
    %s287 = scalar_select %p284, %s285, %s286
    %p290 = pneg %p284
    %p291 = scmp.eq.s32.totalorder %s18, 1
    %p292 = por %p290, %p291
    %p293 = scmp.ne.s32.totalorder %s285, %s288
    %p294 = scmp.eq.s32.totalorder %s18, 0
    %p295 = por %p293, %p294
    %p296 = scmp.ne.s32.totalorder %s285, %s288
    %p297 = scmp.eq.s32.totalorder %s23, 1
    %p298 = por %p296, %p297
    %p299 = scmp.ne.s32.totalorder %s288, %s289
    %p300 = scmp.eq.s32.totalorder %s23, 0
    %p301 = por %p299, %p300
    %p302 = scmp.ne.s32.totalorder %s288, %s289
    %p303 = scmp.eq.s32.totalorder %s24, 1
    %p304 = por %p302, %p303
    %p306 = scmp.ne.s32.totalorder %s289, %s305
    %p307 = scmp.eq.s32.totalorder %s24, 0
    %p308 = por %p306, %p307
    %p309 = scmp.le.s32.totalorder 1, %s18
    %p310 = scmp.lt.s32.totalorder %s18, 3
    %p311 = pnand %p309, %p310
    %p312 = pneg %p311
    // Predicated region
    $region9: #{vit_forward_pallas.5} parent=5 // pred_check
      _
    $region10: #{vit_forward_pallas.5} parent=5 // pred_check_branch
      %314 = sbr.rel (%p311) target = $region12
    $region11: #{vit_forward_pallas.5} parent=5 // pred_region
      %s315 = ssub.s32 %s18, 1
      // Predicated region
      $region13: #{vit_forward_pallas.5} parent=11 // pred_check
        %p316 = pneg %p65
      $region14: #{vit_forward_pallas.5} parent=11 // pred_check_branch
        %318 = sbr.rel (%p316) target = $region16
      $region15: #{vit_forward_pallas.5} parent=11 // pred_region
        _
      $region16: #{vit_forward_pallas.5} parent=11 // pred_fallthru
        _
      // Predicated region
      $region17: #{vit_forward_pallas.5} parent=11 // pred_check
        %p319 = pneg %p86
      $region18: #{vit_forward_pallas.5} parent=11 // pred_check_branch
        %321 = sbr.rel (%p319) target = $region20
      $region19: #{vit_forward_pallas.5} parent=11 // pred_region
        _
      $region20: #{vit_forward_pallas.5} parent=11 // pred_fallthru
        _
      // Predicated region
      $region21: #{vit_forward_pallas.5} parent=11 // pred_check
        %p322 = pneg %p107
      $region22: #{vit_forward_pallas.5} parent=11 // pred_check_branch
        %324 = sbr.rel (%p322) target = $region24
      $region23: #{vit_forward_pallas.5} parent=11 // pred_region
        _
      $region24: #{vit_forward_pallas.5} parent=11 // pred_fallthru
        _
      // Predicated region
      $region25: #{vit_forward_pallas.5} parent=11 // pred_check
        %p325 = pneg %p128
      $region26: #{vit_forward_pallas.5} parent=11 // pred_check_branch
        %327 = sbr.rel (%p325) target = $region28
      $region27: #{vit_forward_pallas.5} parent=11 // pred_region
        _
      $region28: #{vit_forward_pallas.5} parent=11 // pred_fallthru
        _
      // Predicated region
      $region29: #{vit_forward_pallas.5} parent=11 // pred_check
        %p328 = pneg %p149
      $region30: #{vit_forward_pallas.5} parent=11 // pred_check_branch
        %330 = sbr.rel (%p328) target = $region32
      $region31: #{vit_forward_pallas.5} parent=11 // pred_region
        _
      $region32: #{vit_forward_pallas.5} parent=11 // pred_fallthru
        _
      // Predicated region
      $region33: #{vit_forward_pallas.5} parent=11 // pred_check
        %p331 = pneg %p170
      $region34: #{vit_forward_pallas.5} parent=11 // pred_check_branch
        %333 = sbr.rel (%p331) target = $region36
      $region35: #{vit_forward_pallas.5} parent=11 // pred_region
        _
      $region36: #{vit_forward_pallas.5} parent=11 // pred_fallthru
        _
      // Predicated region
      $region37: #{vit_forward_pallas.5} parent=11 // pred_check
        %p334 = pneg %p191
      $region38: #{vit_forward_pallas.5} parent=11 // pred_check_branch
        %336 = sbr.rel (%p334) target = $region40
      $region39: #{vit_forward_pallas.5} parent=11 // pred_region
        _
      $region40: #{vit_forward_pallas.5} parent=11 // pred_fallthru
        _
      // Predicated region
      $region41: #{vit_forward_pallas.5} parent=11 // pred_check
        %p337 = pneg %p212
      $region42: #{vit_forward_pallas.5} parent=11 // pred_check_branch
        %339 = sbr.rel (%p337) target = $region44
      $region43: #{vit_forward_pallas.5} parent=11 // pred_region
        _
      $region44: #{vit_forward_pallas.5} parent=11 // pred_fallthru
        _
      // Predicated region
      $region45: #{vit_forward_pallas.5} parent=11 // pred_check
        %p340 = pneg %p233
      $region46: #{vit_forward_pallas.5} parent=11 // pred_check_branch
        %342 = sbr.rel (%p340) target = $region48
      $region47: #{vit_forward_pallas.5} parent=11 // pred_region
        _
      $region48: #{vit_forward_pallas.5} parent=11 // pred_fallthru
        _
      // Predicated region
      $region49: #{vit_forward_pallas.5} parent=11 // pred_check
        %p343 = pneg %p254
      $region50: #{vit_forward_pallas.5} parent=11 // pred_check_branch
        %345 = sbr.rel (%p343) target = $region52
      $region51: #{vit_forward_pallas.5} parent=11 // pred_region
        _
      $region52: #{vit_forward_pallas.5} parent=11 // pred_fallthru
        _
      // Predicated region
      $region53: #{vit_forward_pallas.5} parent=11 // pred_check
        %p346 = pneg %p275
      $region54: #{vit_forward_pallas.5} parent=11 // pred_check_branch
        %348 = sbr.rel (%p346) target = $region56
      $region55: #{vit_forward_pallas.5} parent=11 // pred_region
        _
      $region56: #{vit_forward_pallas.5} parent=11 // pred_fallthru
        _
    $region12: #{vit_forward_pallas.5} parent=5 // pred_fallthru
      _
    %p349 = scmp.lt.s32.totalorder %s18, 2
    // Predicated region
    $region57: #{vit_forward_pallas.5} parent=5 // pred_check
      %p350 = pneg %p349
    $region58: #{vit_forward_pallas.5} parent=5 // pred_check_branch
      %352 = sbr.rel (%p350) target = $region60
    $region59: #{vit_forward_pallas.5} parent=5 // pred_region
      // Predicated region
      $region61: #{vit_forward_pallas.5} parent=59 // pred_check
        %p353 = pneg %p38
      $region62: #{vit_forward_pallas.5} parent=59 // pred_check_branch
        %355 = sbr.rel (%p353) target = $region64
      $region63: #{vit_forward_pallas.5} parent=59 // pred_region
        %p356 = scmp.lt.s32.totalorder %s18, 1
        %s357 = scalar_select %p356, %s18, 1
        %s358 = smul.addr %s357, 2
        %s359 = smul.addr %s358, 8
        %s360 = scalar_lea.vmem %s0, %s359
      $region64: #{vit_forward_pallas.5} parent=59 // pred_fallthru
        _
    $region60: #{vit_forward_pallas.5} parent=5 // pred_fallthru
      _
    %p361 = scmp.le.s32.totalorder 1, %s18
    %p362 = scmp.lt.s32.totalorder %s18, 3
    %p363 = pnand %p361, %p362
    %p364 = pneg %p363
    // Predicated region
    $region65: #{vit_forward_pallas.5} parent=5 // pred_check
      _
    $region66: #{vit_forward_pallas.5} parent=5 // pred_check_branch
      %366 = sbr.rel (%p363) target = $region68
    $region67: #{vit_forward_pallas.5} parent=5 // pred_region
      %s367 = ssub.s32 %s18, 1
      %p368 = scmp.lt.s32.totalorder %s23, 1
      %s369 = scalar_select %p368, %s23, 1
      %s370 = smul.addr %s369, 2
      %s371 = smul.addr %s370, 8
      %s372 = scalar_lea.vmem %s0, %s371
      %p373 = pneg %p44
      %p374 = pneg %p41
      %p375 = pneg %p65
      %p376 = pneg %p62
      %p377 = pneg %p86
      %p378 = pneg %p83
      %p379 = pneg %p107
      %p380 = pneg %p104
      %p381 = pneg %p128
      %p382 = pneg %p125
      %p383 = pneg %p149
      %p384 = pneg %p146
      %p385 = pneg %p170
      %p386 = pneg %p167
      %p387 = pneg %p191
      %p388 = pneg %p188
      %p389 = pneg %p212
      %p390 = pneg %p209
      %p391 = pneg %p233
      %p392 = pneg %p230
      %p393 = pneg %p254
      %p394 = pneg %p251
      %p395 = pneg %p275
      %p396 = pneg %p272
      %p397 = pneg %p301
      %p398 = pneg %p298
      %p399 = scmp.lt.s32.totalorder %s23, 1
      %s400 = scalar_select %p399, %s23, 1
      %s401 = smul.addr %s400, 2
      %s402 = smul.addr %s401, 8
      %s403 = scalar_lea.vmem %s12, %s402
      %p404 = scmp.lt.s32.totalorder %s23, 1
      %s405 = scalar_select %p404, %s23, 1
      %s406 = smul.addr %s405, 2
      %s407 = smul.addr %s406, 8
      %s408 = scalar_lea.vmem %s0, %s407
      %p409 = scmp.lt.s32.totalorder %s23, 1
      %s410 = scalar_select %p409, %s23, 1
      %s411 = smul.addr %s410, 2
      %s412 = smul.addr %s411, 8
      %s413 = scalar_lea.vmem %s12, %s412
      %v415 = vld [vmem:[%s408] sm:$0xff]
      %v416 = vld [vmem:[%s408 + $0x8] sm:$0xff]
      %v417 = vld [vmem:[%s1] sm:$0x1]
      %v418 = vld [vmem:[%s2] sm:$0x1]
      %vm419 = vcmask 261120
      %v420 = vsel %vm419, %v415, 0.0
      %421 = vadd.xlane.f32.xlu0 %v420
      %v422 = vpop.xlane.xlu0 %421
      %v423 = vsel %vm419, %v416, 0.0
      %424 = vadd.xlane.f32.xlu0 %v423
      %v425 = vpop.xlane.xlu0 %424
      %v426 = vrcp.pop 32.0
      %v427 = vmul.f32 %v422, %v426
      %v428 = vmul.f32 %v425, %v426
      %v429 = vsub.f32 %v415, %v427
      %v430 = vsub.f32 %v416, %v428
      %v431 = vmul.f32 %v429, %v429
      %v432 = vmul.f32 %v430, %v430
      %v433 = vsel %vm419, %v431, 0.0
      %434 = vadd.xlane.f32.xlu0 %v433
      %v435 = vpop.xlane.xlu0 %434
      %v436 = vsel %vm419, %v432, 0.0
      %437 = vadd.xlane.f32.xlu0 %v436
      %v438 = vpop.xlane.xlu0 %437
      %v439 = vmul.f32 %v435, %v426
      %v440 = vmul.f32 %v438, %v426
      %v441 = vadd.f32 %v439, 1e-05
      %v442 = vadd.f32 %v440, 1e-05
      %v443 = vrsqrt.pop %v441
      %v444 = vrsqrt.pop %v442
      %v445 = vmul.f32 %v429, %v443
      %v446 = vmul.f32 %v430, %v444
      %v448 = vlaneseq
      %v449 = vshrl.u32 %v448, 7
      %v450 = vsub.s32 0, %v449
      %v451 = vrot.slane %v417, %v450
      %v453 = vmul.f32 %v445, %v451
      %v454 = vmul.f32 %v446, %v451
      %v456 = vlaneseq
      %v457 = vshrl.u32 %v456, 7
      %v458 = vsub.s32 0, %v457
      %v459 = vrot.slane %v418, %v458
      %v461 = vadd.f32 %v453, %v459
      %v462 = vadd.f32 %v454, %v459
      %v463 = vpack.c.bf16 %v462, %v461
      %v464 = vld [vmem:[%s3] sm:$0xf]
      %v465 = vld [vmem:[%s3 + $0x4] sm:$0xf]
      %v466 = vld [vmem:[%s3 + $0x8] sm:$0xf]
      %v467 = vld [vmem:[%s3 + $0xc] sm:$0xf]
      %v472 = vunpack.c.l.b16 %v464
      %v473 = vunpack.c.l.b16 %v465
      %v474 = vunpack.c.l.b16 %v466
      %v475 = vunpack.c.l.b16 %v467
      %v476 = vpack.c.b16 %v473, %v472
      %v477 = vpack.c.b16 %v475, %v474
      %v481 = vsel %vm419, %v463, 0
      %483 = vmatprep.subr.bf16.mxu0 0
      %484 = vmatpush1.bf16.msra.mxu0 %v476
      %485 = vmatprep.subr.bf16.mxu0 0
      %486 = vmatpush1.bf16.msra.mxu0 %v477
      %487 = vmatprep.subr.bf16.mxu0 0
      %488 = vmatpush1.bf16.msra.mxu0 0
      %489 = vmatprep.subr.bf16.mxu0 0
      %490 = vmatpush1.bf16.msra.mxu0 0
      %491 = vmatprep.subr.bf16.mxu0 0
      %492 = vmatpush1.bf16.msra.mxu0 0
      %493 = vmatprep.subr.bf16.mxu0 0
      %494 = vmatpush1.bf16.msra.mxu0 0
      %495 = vmatprep.subr.bf16.mxu0 0
      %496 = vmatpush1.bf16.msra.mxu0 0
      %497 = vmatprep.subr.bf16.mxu0 0
      %498 = vmatpush1.bf16.msra.mxu0 0
      %499 = vmatprep.subr.bf16.mxu0 0
      %500 = vmatpush1.bf16.msra.mxu0 0
      %501 = vmatprep.subr.bf16.mxu0 0
      %502 = vmatpush1.bf16.msra.mxu0 0
      %503 = vmatprep.subr.bf16.mxu0 0
      %504 = vmatpush1.bf16.msra.mxu0 0
      %505 = vmatprep.subr.bf16.mxu0 0
      %506 = vmatpush1.bf16.msra.mxu0 0
      %507 = vmatprep.subr.bf16.mxu0 0
      %508 = vmatpush1.bf16.msra.mxu0 0
      %509 = vmatprep.subr.bf16.mxu0 0
      %510 = vmatpush1.bf16.msra.mxu0 0
      %511 = vmatprep.subr.bf16.mxu0 0
      %512 = vmatpush1.bf16.msra.mxu0 0
      %513 = vmatprep.subr.bf16.mxu0 0
      %514 = vmatpush1.bf16.msra.mxu0 0
      %515 = vmatprep.mubr.bf16.mxu0 0
      %516 = vmatmul.mubr.bf16.gmra.mrb[0].mxu0 %v481
      %v517 = vpop.f32.mrb[0].mxu0
      %v518 = vadd.f32 0.0, %v517
      %v519 = vpop.f32.mrb[0].mxu0
      %v520 = vpop.f32.mrb[0].mxu0
      %v521 = vadd.f32 0.0, %v520
      %v522 = vpop.f32.mrb[0].mxu0
      %523 = vdwg.mxu0
      %v524 = vmul.f32 %v518, 0.25
      %v525 = vmul.f32 %v521, 0.25
      %v526 = vpack.c.bf16 %v525, %v524
      %v527 = vpack.c.bf16 %v521, %v518
      %529 = vrot.lane.b32.xlu0 %v527, 96
      %v530 = vpop.permute.xlu0 %529
      %vm531 = vcmask 130048
      %v533 = vsel %vm531, %v526, 0
      %v536 = vsel %vm531, %v530, 0
      %538 = vmatprep.subr.bf16.mxu0 0
      %539 = vmatpush1.bf16.xpose.msra.mxu0 %v536
      %540 = vmatprep.subr.bf16.mxu0 0
      %541 = vmatpush1.bf16.xpose.msra.mxu0 0
      %542 = vmatprep.subr.bf16.mxu0 0
      %543 = vmatpush1.bf16.xpose.msra.mxu0 0
      %544 = vmatprep.subr.bf16.mxu0 0
      %545 = vmatpush1.bf16.xpose.msra.mxu0 0
      %546 = vmatprep.subr.bf16.mxu0 0
      %547 = vmatpush1.bf16.xpose.msra.mxu0 0
      %548 = vmatprep.subr.bf16.mxu0 0
      %549 = vmatpush1.bf16.xpose.msra.mxu0 0
      %550 = vmatprep.subr.bf16.mxu0 0
      %551 = vmatpush1.bf16.xpose.msra.mxu0 0
      %552 = vmatprep.subr.bf16.mxu0 0
      %553 = vmatpush1.bf16.xpose.msra.mxu0 0
      %554 = vmatprep.subr.bf16.mxu0 0
      %555 = vmatpush1.bf16.xpose.msra.mxu0 0
      %556 = vmatprep.subr.bf16.mxu0 0
      %557 = vmatpush1.bf16.xpose.msra.mxu0 0
      %558 = vmatprep.subr.bf16.mxu0 0
      %559 = vmatpush1.bf16.xpose.msra.mxu0 0
      %560 = vmatprep.subr.bf16.mxu0 0
      %561 = vmatpush1.bf16.xpose.msra.mxu0 0
      %562 = vmatprep.subr.bf16.mxu0 0
      %563 = vmatpush1.bf16.xpose.msra.mxu0 0
      %564 = vmatprep.subr.bf16.mxu0 0
      %565 = vmatpush1.bf16.xpose.msra.mxu0 0
      %566 = vmatprep.subr.bf16.mxu0 0
      %567 = vmatpush1.bf16.xpose.msra.mxu0 0
      %568 = vmatprep.subr.bf16.mxu0 0
      %569 = vmatpush1.bf16.xpose.msra.mxu0 0
      %570 = vmatprep.mubr.bf16.mxu0 0
      %571 = vmatmul.mubr.bf16.gmra.mrb[0].mxu0 %v533
      %v572 = vpop.f32.mrb[0].mxu0
      %v573 = vadd.f32 0.0, %v572
      %v574 = vpop.f32.mrb[0].mxu0
      %v575 = vpop.f32.mrb[0].mxu0
      %v576 = vadd.f32 0.0, %v575
      %v577 = vpop.f32.mrb[0].mxu0
      %578 = vdwg.mxu0
      %v579 = vsel %vm531, %v573, -inf
      %580 = vmax.xlane.f32.xlu0 %v579
      %v581 = vpop.xlane.xlu0 %580
      %v582 = vsel %vm531, %v576, -inf
      %583 = vmax.xlane.f32.xlu0 %v582
      %v584 = vpop.xlane.xlu0 %583
      %v585 = vsub.f32 %v573, %v581
      %v586 = vsub.f32 %v576, %v584
      %v587 = vmul.f32 %v585, 1.442695
      %v588 = vpow.pop %v587
      %v589 = vmul.f32 %v586, 1.442695
      %v590 = vpow.pop %v589
      %v591 = vsel %vm531, %v588, 0.0
      %592 = vadd.xlane.f32.xlu0 %v591
      %v593 = vpop.xlane.xlu0 %592
      %v594 = vsel %vm531, %v590, 0.0
      %595 = vadd.xlane.f32.xlu0 %v594
      %v596 = vpop.xlane.xlu0 %595
      %v597 = vrcp.pop %v593
      %v598 = vrcp.pop %v596
      %v599 = vmul.f32 %v593, %v597
      %v600 = vmul.f32 %v596, %v598
      %v601 = vsub.f32 2.0, %v599
      %v602 = vsub.f32 2.0, %v600
      %v603 = vmul.f32 %v597, %v601
      %v604 = vmul.f32 %v598, %v602
      %v605 = vmul.f32 %v588, %v603
      %v606 = vmul.f32 %v590, %v604
      %v607 = vpack.c.bf16 %v606, %v605
      %608 = vrot.lane.b32.xlu0 %v527, 64
      %v609 = vpop.permute.xlu0 %608
      %v612 = vsel %vm531, %v607, 0
      %614 = vmatprep.subr.bf16.mxu0 0
      %615 = vmatpush1.bf16.msra.mxu0 %v609
      %616 = vmatprep.subr.bf16.mxu0 0
      %617 = vmatpush1.bf16.msra.mxu0 0
      %618 = vmatprep.subr.bf16.mxu0 0
      %619 = vmatpush1.bf16.msra.mxu0 0
      %620 = vmatprep.subr.bf16.mxu0 0
      %621 = vmatpush1.bf16.msra.mxu0 0
      %622 = vmatprep.subr.bf16.mxu0 0
      %623 = vmatpush1.bf16.msra.mxu0 0
      %624 = vmatprep.subr.bf16.mxu0 0
      %625 = vmatpush1.bf16.msra.mxu0 0
      %626 = vmatprep.subr.bf16.mxu0 0
      %627 = vmatpush1.bf16.msra.mxu0 0
      %628 = vmatprep.subr.bf16.mxu0 0
      %629 = vmatpush1.bf16.msra.mxu0 0
      %630 = vmatprep.subr.bf16.mxu0 0
      %631 = vmatpush1.bf16.msra.mxu0 0
      %632 = vmatprep.subr.bf16.mxu0 0
      %633 = vmatpush1.bf16.msra.mxu0 0
      %634 = vmatprep.subr.bf16.mxu0 0
      %635 = vmatpush1.bf16.msra.mxu0 0
      %636 = vmatprep.subr.bf16.mxu0 0
      %637 = vmatpush1.bf16.msra.mxu0 0
      %638 = vmatprep.subr.bf16.mxu0 0
      %639 = vmatpush1.bf16.msra.mxu0 0
      %640 = vmatprep.subr.bf16.mxu0 0
      %641 = vmatpush1.bf16.msra.mxu0 0
      %642 = vmatprep.subr.bf16.mxu0 0
      %643 = vmatpush1.bf16.msra.mxu0 0
      %644 = vmatprep.subr.bf16.mxu0 0
      %645 = vmatpush1.bf16.msra.mxu0 0
      %646 = vmatprep.mubr.bf16.mxu0 0
      %647 = vmatmul.mubr.bf16.gmra.mrb[0].mxu0 %v612
      %v648 = vpop.f32.mrb[0].mxu0
      %v649 = vadd.f32 0.0, %v648
      %v650 = vpop.f32.mrb[0].mxu0
      %v651 = vpop.f32.mrb[0].mxu0
      %v652 = vadd.f32 0.0, %v651
      %v653 = vpop.f32.mrb[0].mxu0
      %654 = vdwg.mxu0
      %655 = vst.msk [vmem:[#allocation2] sm:$0xff] %vm531, %v649
      %656 = vst.msk [vmem:[#allocation2 + $0x8] sm:$0xff] %vm531, %v652
      %658 = vrot.lane.b32.xlu0 %v526, 112
      %v659 = vpop.permute.xlu0 %658
      %660 = vrot.lane.b32.xlu0 %v527, 80
      %v661 = vpop.permute.xlu0 %660
      %v663 = vsel %vm531, %v659, 0
      %v666 = vsel %vm531, %v661, 0
      %668 = vmatprep.subr.bf16.mxu0 0
      %669 = vmatpush1.bf16.xpose.msra.mxu0 %v666
      %670 = vmatprep.subr.bf16.mxu0 0
      %671 = vmatpush1.bf16.xpose.msra.mxu0 0
      %672 = vmatprep.subr.bf16.mxu0 0
      %673 = vmatpush1.bf16.xpose.msra.mxu0 0
      %674 = vmatprep.subr.bf16.mxu0 0
      %675 = vmatpush1.bf16.xpose.msra.mxu0 0
      %676 = vmatprep.subr.bf16.mxu0 0
      %677 = vmatpush1.bf16.xpose.msra.mxu0 0
      %678 = vmatprep.subr.bf16.mxu0 0
      %679 = vmatpush1.bf16.xpose.msra.mxu0 0
      %680 = vmatprep.subr.bf16.mxu0 0
      %681 = vmatpush1.bf16.xpose.msra.mxu0 0
      %682 = vmatprep.subr.bf16.mxu0 0
      %683 = vmatpush1.bf16.xpose.msra.mxu0 0
      %684 = vmatprep.subr.bf16.mxu0 0
      %685 = vmatpush1.bf16.xpose.msra.mxu0 0
      %686 = vmatprep.subr.bf16.mxu0 0
      %687 = vmatpush1.bf16.xpose.msra.mxu0 0
      %688 = vmatprep.subr.bf16.mxu0 0
      %689 = vmatpush1.bf16.xpose.msra.mxu0 0
      %690 = vmatprep.subr.bf16.mxu0 0
      %691 = vmatpush1.bf16.xpose.msra.mxu0 0
      %692 = vmatprep.subr.bf16.mxu0 0
      %693 = vmatpush1.bf16.xpose.msra.mxu0 0
      %694 = vmatprep.subr.bf16.mxu0 0
      %695 = vmatpush1.bf16.xpose.msra.mxu0 0
      %696 = vmatprep.subr.bf16.mxu0 0
      %697 = vmatpush1.bf16.xpose.msra.mxu0 0
      %698 = vmatprep.subr.bf16.mxu0 0
      %699 = vmatpush1.bf16.xpose.msra.mxu0 0
      %700 = vmatprep.mubr.bf16.mxu0 0
      %701 = vmatmul.mubr.bf16.gmra.mrb[0].mxu0 %v663
      %v702 = vpop.f32.mrb[0].mxu0
      %v703 = vadd.f32 0.0, %v702
      %v704 = vpop.f32.mrb[0].mxu0
      %v705 = vpop.f32.mrb[0].mxu0
      %v706 = vadd.f32 0.0, %v705
      %v707 = vpop.f32.mrb[0].mxu0
      %708 = vdwg.mxu0
      %v709 = vsel %vm531, %v703, -inf
      %710 = vmax.xlane.f32.xlu0 %v709
      %v711 = vpop.xlane.xlu0 %710
      %v712 = vsel %vm531, %v706, -inf
      %713 = vmax.xlane.f32.xlu0 %v712
      %v714 = vpop.xlane.xlu0 %713
      %v715 = vsub.f32 %v703, %v711
      %v716 = vsub.f32 %v706, %v714
      %v717 = vmul.f32 %v715, 1.442695
      %v718 = vpow.pop %v717
      %v719 = vmul.f32 %v716, 1.442695
      %v720 = vpow.pop %v719
      %v721 = vsel %vm531, %v718, 0.0
      %722 = vadd.xlane.f32.xlu0 %v721
      %v723 = vpop.xlane.xlu0 %722
      %v724 = vsel %vm531, %v720, 0.0
      %725 = vadd.xlane.f32.xlu0 %v724
      %v726 = vpop.xlane.xlu0 %725
      %v727 = vrcp.pop %v723
      %v728 = vrcp.pop %v726
      %v729 = vmul.f32 %v723, %v727
      %v730 = vmul.f32 %v726, %v728
      %v731 = vsub.f32 2.0, %v729
      %v732 = vsub.f32 2.0, %v730
      %v733 = vmul.f32 %v727, %v731
      %v734 = vmul.f32 %v728, %v732
      %v735 = vmul.f32 %v718, %v733
      %v736 = vmul.f32 %v720, %v734
      %v737 = vpack.c.bf16 %v736, %v735
      %738 = vrot.lane.b32.xlu0 %v527, 48
      %v739 = vpop.permute.xlu0 %738
      %v742 = vsel %vm531, %v737, 0
      %744 = vmatprep.subr.bf16.mxu0 0
      %745 = vmatpush1.bf16.msra.mxu0 %v739
      %746 = vmatprep.subr.bf16.mxu0 0
      %747 = vmatpush1.bf16.msra.mxu0 0
      %748 = vmatprep.subr.bf16.mxu0 0
      %749 = vmatpush1.bf16.msra.mxu0 0
      %750 = vmatprep.subr.bf16.mxu0 0
      %751 = vmatpush1.bf16.msra.mxu0 0
      %752 = vmatprep.subr.bf16.mxu0 0
      %753 = vmatpush1.bf16.msra.mxu0 0
      %754 = vmatprep.subr.bf16.mxu0 0
      %755 = vmatpush1.bf16.msra.mxu0 0
      %756 = vmatprep.subr.bf16.mxu0 0
      %757 = vmatpush1.bf16.msra.mxu0 0
      %758 = vmatprep.subr.bf16.mxu0 0
      %759 = vmatpush1.bf16.msra.mxu0 0
      %760 = vmatprep.subr.bf16.mxu0 0
      %761 = vmatpush1.bf16.msra.mxu0 0
      %762 = vmatprep.subr.bf16.mxu0 0
      %763 = vmatpush1.bf16.msra.mxu0 0
      %764 = vmatprep.subr.bf16.mxu0 0
      %765 = vmatpush1.bf16.msra.mxu0 0
      %766 = vmatprep.subr.bf16.mxu0 0
      %767 = vmatpush1.bf16.msra.mxu0 0
      %768 = vmatprep.subr.bf16.mxu0 0
      %769 = vmatpush1.bf16.msra.mxu0 0
      %770 = vmatprep.subr.bf16.mxu0 0
      %771 = vmatpush1.bf16.msra.mxu0 0
      %772 = vmatprep.subr.bf16.mxu0 0
      %773 = vmatpush1.bf16.msra.mxu0 0
      %774 = vmatprep.subr.bf16.mxu0 0
      %775 = vmatpush1.bf16.msra.mxu0 0
      %776 = vmatprep.mubr.bf16.mxu0 0
      %777 = vmatmul.mubr.bf16.gmra.mrb[0].mxu0 %v742
      %v778 = vpop.f32.mrb[0].mxu0
      %v779 = vadd.f32 0.0, %v778
      %v780 = vpop.f32.mrb[0].mxu0
      %v781 = vpop.f32.mrb[0].mxu0
      %v782 = vadd.f32 0.0, %v781
      %v783 = vpop.f32.mrb[0].mxu0
      %784 = vdwg.mxu0
      %787 = vrot.lane.b32.xlu0 %v779, 16
      %v788 = vpop.permute.xlu0 %787
      %789 = vrot.lane.b32.xlu0 %v782, 16
      %v790 = vpop.permute.xlu0 %789
      %vm793 = vcmask 261248
      %794 = vst.msk [vmem:[#allocation2] sm:$0xff] %vm793, %v788
      %795 = vst.msk [vmem:[#allocation2 + $0x8] sm:$0xff] %vm793, %v790
      %v796 = vld [vmem:[#allocation2] sm:$0xff]
      %v797 = vld [vmem:[#allocation2 + $0x8] sm:$0xff]
      %v798 = vpack.c.bf16 %v797, %v796
      %v799 = vld [vmem:[%s4] sm:$0xf]
      %v800 = vld [vmem:[%s4 + $0x4] sm:$0xf]
      %v801 = vld [vmem:[%s4 + $0x8] sm:$0xf]
      %v802 = vld [vmem:[%s4 + $0xc] sm:$0xf]
      %v803 = vld [vmem:[%s5] sm:$0x1]
      %v805 = vlaneseq
      %v806 = vshrl.u32 %v805, 7
      %v807 = vsub.s32 0, %v806
      %v808 = vrot.slane %v803, %v807
      %v814 = vunpack.c.l.b16 %v799
      %v815 = vunpack.c.l.b16 %v800
      %v816 = vunpack.c.l.b16 %v801
      %v817 = vunpack.c.l.b16 %v802
      %v818 = vpack.c.b16 %v815, %v814
      %v819 = vpack.c.b16 %v817, %v816
      %v823 = vsel %vm419, %v798, 0
      %825 = vmatprep.subr.bf16.mxu0 0
      %826 = vmatpush1.bf16.msra.mxu0 %v818
      %827 = vmatprep.subr.bf16.mxu0 0
      %828 = vmatpush1.bf16.msra.mxu0 %v819
      %829 = vmatprep.subr.bf16.mxu0 0
      %830 = vmatpush1.bf16.msra.mxu0 0
      %831 = vmatprep.subr.bf16.mxu0 0
      %832 = vmatpush1.bf16.msra.mxu0 0
      %833 = vmatprep.subr.bf16.mxu0 0
      %834 = vmatpush1.bf16.msra.mxu0 0
      %835 = vmatprep.subr.bf16.mxu0 0
      %836 = vmatpush1.bf16.msra.mxu0 0
      %837 = vmatprep.subr.bf16.mxu0 0
      %838 = vmatpush1.bf16.msra.mxu0 0
      %839 = vmatprep.subr.bf16.mxu0 0
      %840 = vmatpush1.bf16.msra.mxu0 0
      %841 = vmatprep.subr.bf16.mxu0 0
      %842 = vmatpush1.bf16.msra.mxu0 0
      %843 = vmatprep.subr.bf16.mxu0 0
      %844 = vmatpush1.bf16.msra.mxu0 0
      %845 = vmatprep.subr.bf16.mxu0 0
      %846 = vmatpush1.bf16.msra.mxu0 0
      %847 = vmatprep.subr.bf16.mxu0 0
      %848 = vmatpush1.bf16.msra.mxu0 0
      %849 = vmatprep.subr.bf16.mxu0 0
      %850 = vmatpush1.bf16.msra.mxu0 0
      %851 = vmatprep.subr.bf16.mxu0 0
      %852 = vmatpush1.bf16.msra.mxu0 0
      %853 = vmatprep.subr.bf16.mxu0 0
      %854 = vmatpush1.bf16.msra.mxu0 0
      %855 = vmatprep.subr.bf16.mxu0 0
      %856 = vmatpush1.bf16.msra.mxu0 0
      %857 = vmatprep.mubr.bf16.mxu0 0
      %858 = vmatmul.mubr.bf16.gmra.mrb[0].mxu0 %v823
      %v859 = vpop.f32.mrb[0].mxu0
      %v860 = vadd.f32 %v808, %v859
      %v861 = vpop.f32.mrb[0].mxu0
      %v862 = vpop.f32.mrb[0].mxu0
      %v863 = vadd.f32 %v808, %v862
      %v864 = vpop.f32.mrb[0].mxu0
      %865 = vdwg.mxu0
      %v866 = vadd.f32 %v415, %v860
      %v867 = vadd.f32 %v416, %v863
      %v868 = vld [vmem:[%s6] sm:$0x1]
      %v869 = vld [vmem:[%s7] sm:$0x1]
      %v870 = vsel %vm419, %v866, 0.0
      %871 = vadd.xlane.f32.xlu0 %v870
      %v872 = vpop.xlane.xlu0 %871
      %v873 = vsel %vm419, %v867, 0.0
      %874 = vadd.xlane.f32.xlu0 %v873
      %v875 = vpop.xlane.xlu0 %874
      %v876 = vmul.f32 %v872, %v426
      %v877 = vmul.f32 %v875, %v426
      %v878 = vsub.f32 %v866, %v876
      %v879 = vsub.f32 %v867, %v877
      %v880 = vmul.f32 %v878, %v878
      %v881 = vmul.f32 %v879, %v879
      %v882 = vsel %vm419, %v880, 0.0
      %883 = vadd.xlane.f32.xlu0 %v882
      %v884 = vpop.xlane.xlu0 %883
      %v885 = vsel %vm419, %v881, 0.0
      %886 = vadd.xlane.f32.xlu0 %v885
      %v887 = vpop.xlane.xlu0 %886
      %v888 = vmul.f32 %v884, %v426
      %v889 = vmul.f32 %v887, %v426
      %v890 = vadd.f32 %v888, 1e-05
      %v891 = vadd.f32 %v889, 1e-05
      %v892 = vrsqrt.pop %v890
      %v893 = vrsqrt.pop %v891
      %v894 = vmul.f32 %v878, %v892
      %v895 = vmul.f32 %v879, %v893
      %v897 = vlaneseq
      %v898 = vshrl.u32 %v897, 7
      %v899 = vsub.s32 0, %v898
      %v900 = vrot.slane %v868, %v899
      %v902 = vmul.f32 %v894, %v900
      %v903 = vmul.f32 %v895, %v900
      %v905 = vlaneseq
      %v906 = vshrl.u32 %v905, 7
      %v907 = vsub.s32 0, %v906
      %v908 = vrot.slane %v869, %v907
      %v910 = vadd.f32 %v902, %v908
      %v911 = vadd.f32 %v903, %v908
      %v912 = vpack.c.bf16 %v911, %v910
      %v913 = vld [vmem:[%s8] sm:$0xf]
      %v914 = vld [vmem:[%s8 + $0x4] sm:$0xf]
      %v915 = vld [vmem:[%s8 + $0x8] sm:$0xf]
      %v916 = vld [vmem:[%s8 + $0xc] sm:$0xf]
      %v917 = vld [vmem:[%s9] sm:$0x1]
      %v919 = vlaneseq
      %v920 = vshrl.u32 %v919, 7
      %v921 = vsub.s32 0, %v920
      %v922 = vrot.slane %v917, %v921
      %v928 = vunpack.c.l.b16 %v913
      %v929 = vunpack.c.l.b16 %v914
      %v930 = vunpack.c.l.b16 %v915
      %v931 = vunpack.c.l.b16 %v916
      %v932 = vpack.c.b16 %v929, %v928
      %v933 = vpack.c.b16 %v931, %v930
      %v937 = vsel %vm419, %v912, 0
      %939 = vmatprep.subr.bf16.mxu0 0
      %940 = vmatpush1.bf16.msra.mxu0 %v932
      %941 = vmatprep.subr.bf16.mxu0 0
      %942 = vmatpush1.bf16.msra.mxu0 %v933
      %943 = vmatprep.subr.bf16.mxu0 0
      %944 = vmatpush1.bf16.msra.mxu0 0
      %945 = vmatprep.subr.bf16.mxu0 0
      %946 = vmatpush1.bf16.msra.mxu0 0
      %947 = vmatprep.subr.bf16.mxu0 0
      %948 = vmatpush1.bf16.msra.mxu0 0
      %949 = vmatprep.subr.bf16.mxu0 0
      %950 = vmatpush1.bf16.msra.mxu0 0
      %951 = vmatprep.subr.bf16.mxu0 0
      %952 = vmatpush1.bf16.msra.mxu0 0
      %953 = vmatprep.subr.bf16.mxu0 0
      %954 = vmatpush1.bf16.msra.mxu0 0
      %955 = vmatprep.subr.bf16.mxu0 0
      %956 = vmatpush1.bf16.msra.mxu0 0
      %957 = vmatprep.subr.bf16.mxu0 0
      %958 = vmatpush1.bf16.msra.mxu0 0
      %959 = vmatprep.subr.bf16.mxu0 0
      %960 = vmatpush1.bf16.msra.mxu0 0
      %961 = vmatprep.subr.bf16.mxu0 0
      %962 = vmatpush1.bf16.msra.mxu0 0
      %963 = vmatprep.subr.bf16.mxu0 0
      %964 = vmatpush1.bf16.msra.mxu0 0
      %965 = vmatprep.subr.bf16.mxu0 0
      %966 = vmatpush1.bf16.msra.mxu0 0
      %967 = vmatprep.subr.bf16.mxu0 0
      %968 = vmatpush1.bf16.msra.mxu0 0
      %969 = vmatprep.subr.bf16.mxu0 0
      %970 = vmatpush1.bf16.msra.mxu0 0
      %971 = vmatprep.mubr.bf16.mxu0 0
      %972 = vmatmul.mubr.bf16.gmra.mrb[0].mxu0 %v937
      %v973 = vpop.f32.mrb[0].mxu0
      %v974 = vadd.f32 %v922, %v973
      %v975 = vpop.f32.mrb[0].mxu0
      %v976 = vpop.f32.mrb[0].mxu0
      %v977 = vadd.f32 %v922, %v976
      %v978 = vpop.f32.mrb[0].mxu0
      %979 = vdwg.mxu0
      %v980 = vmul.f32 %v974, 0.5
      %v981 = vmul.f32 %v977, 0.5
      %v982 = vmul.f32 %v974, 0.044715
      %v983 = vmul.f32 %v977, 0.044715
      %v984 = vmul.f32 %v982, %v974
      %v985 = vmul.f32 %v983, %v977
      %v986 = vmul.f32 %v984, %v974
      %v987 = vmul.f32 %v985, %v977
      %v988 = vadd.f32 %v974, %v986
      %v989 = vadd.f32 %v977, %v987
      %v990 = vmul.f32 %v988, 0.7978846
      %v991 = vmul.f32 %v989, 0.7978846
      %v992 = vtanh.pop %v990
      %v993 = vtanh.pop %v991
      %v994 = vadd.f32 %v992, 1.0
      %v995 = vadd.f32 %v993, 1.0
      %v996 = vmul.f32 %v980, %v994
      %v997 = vmul.f32 %v981, %v995
      %v998 = vpack.c.bf16 %v997, %v996
      %v999 = vld [vmem:[%s10] sm:$0xf]
      %v1000 = vld [vmem:[%s10 + $0x4] sm:$0xf]
      %v1001 = vld [vmem:[%s10 + $0x8] sm:$0xf]
      %v1002 = vld [vmem:[%s10 + $0xc] sm:$0xf]
      %v1003 = vld [vmem:[%s10 + $0x10] sm:$0xf]
      %v1004 = vld [vmem:[%s10 + $0x14] sm:$0xf]
      %v1005 = vld [vmem:[%s10 + $0x18] sm:$0xf]
      %v1006 = vld [vmem:[%s10 + $0x1c] sm:$0xf]
      %v1007 = vld [vmem:[%s11] sm:$0x1]
      %v1009 = vlaneseq
      %v1010 = vshrl.u32 %v1009, 7
      %v1011 = vsub.s32 0, %v1010
      %v1012 = vrot.slane %v1007, %v1011
      %v1022 = vunpack.c.l.b16 %v999
      %v1023 = vunpack.c.l.b16 %v1000
      %v1024 = vunpack.c.l.b16 %v1001
      %v1025 = vunpack.c.l.b16 %v1002
      %v1026 = vunpack.c.l.b16 %v1003
      %v1027 = vunpack.c.l.b16 %v1004
      %v1028 = vunpack.c.l.b16 %v1005
      %v1029 = vunpack.c.l.b16 %v1006
      %v1030 = vpack.c.b16 %v1023, %v1022
      %v1031 = vpack.c.b16 %v1025, %v1024
      %v1032 = vpack.c.b16 %v1027, %v1026
      %v1033 = vpack.c.b16 %v1029, %v1028
      %vm1038 = vcmask 523264
      %v1040 = vsel %vm1038, %v998, 0
      %1042 = vmatprep.subr.bf16.mxu0 0
      %1043 = vmatpush1.bf16.msra.mxu0 %v1030
      %1044 = vmatprep.subr.bf16.mxu0 0
      %1045 = vmatpush1.bf16.msra.mxu0 %v1031
      %1046 = vmatprep.subr.bf16.mxu0 0
      %1047 = vmatpush1.bf16.msra.mxu0 %v1032
      %1048 = vmatprep.subr.bf16.mxu0 0
      %1049 = vmatpush1.bf16.msra.mxu0 %v1033
      %1050 = vmatprep.subr.bf16.mxu0 0
      %1051 = vmatpush1.bf16.msra.mxu0 0
      %1052 = vmatprep.subr.bf16.mxu0 0
      %1053 = vmatpush1.bf16.msra.mxu0 0
      %1054 = vmatprep.subr.bf16.mxu0 0
      %1055 = vmatpush1.bf16.msra.mxu0 0
      %1056 = vmatprep.subr.bf16.mxu0 0
      %1057 = vmatpush1.bf16.msra.mxu0 0
      %1058 = vmatprep.subr.bf16.mxu0 0
      %1059 = vmatpush1.bf16.msra.mxu0 0
      %1060 = vmatprep.subr.bf16.mxu0 0
      %1061 = vmatpush1.bf16.msra.mxu0 0
      %1062 = vmatprep.subr.bf16.mxu0 0
      %1063 = vmatpush1.bf16.msra.mxu0 0
      %1064 = vmatprep.subr.bf16.mxu0 0
      %1065 = vmatpush1.bf16.msra.mxu0 0
      %1066 = vmatprep.subr.bf16.mxu0 0
      %1067 = vmatpush1.bf16.msra.mxu0 0
      %1068 = vmatprep.subr.bf16.mxu0 0
      %1069 = vmatpush1.bf16.msra.mxu0 0
      %1070 = vmatprep.subr.bf16.mxu0 0
      %1071 = vmatpush1.bf16.msra.mxu0 0
      %1072 = vmatprep.subr.bf16.mxu0 0
      %1073 = vmatpush1.bf16.msra.mxu0 0
      %1074 = vmatprep.mubr.bf16.mxu0 0
      %1075 = vmatmul.mubr.bf16.gmra.mrb[0].mxu0 %v1040
      %v1076 = vpop.f32.mrb[0].mxu0
      %v1077 = vadd.f32 %v1012, %v1076
      %v1078 = vpop.f32.mrb[0].mxu0
      %v1079 = vpop.f32.mrb[0].mxu0
      %v1080 = vadd.f32 %v1012, %v1079
      %v1081 = vpop.f32.mrb[0].mxu0
      %1082 = vdwg.mxu0
      %v1083 = vadd.f32 %v866, %v1077
      %v1084 = vadd.f32 %v867, %v1080
      %1085 = vst.msk [vmem:[%s413] sm:$0xff] %vm419, %v1083
      %1086 = vst.msk [vmem:[%s413 + $0x8] sm:$0xff] %vm419, %v1084
      %p1087 = scmp.lt.s32.totalorder %s23, 1
      %s1088 = scalar_select %p1087, %s23, 1
      %s1089 = smul.addr %s1088, 2
      %s1090 = smul.addr %s1089, 8
      %s1091 = scalar_lea.vmem %s12, %s1090
      // Predicated region
      $region69: #{vit_forward_pallas.5} parent=67 // pred_check
        %p1092 = pneg %p298
      $region70: #{vit_forward_pallas.5} parent=67 // pred_check_branch
        %1094 = sbr.rel (%p1092) target = $region72
      $region71: #{vit_forward_pallas.5} parent=67 // pred_region
        _
      $region72: #{vit_forward_pallas.5} parent=67 // pred_fallthru
        _
    $region68: #{vit_forward_pallas.5} parent=5 // pred_fallthru
      _
    %p1095 = scmp.le.s32.totalorder 2, %s18
    // Predicated region
    $region73: #{vit_forward_pallas.5} parent=5 // pred_check
      %p1096 = pneg %p1095
    $region74: #{vit_forward_pallas.5} parent=5 // pred_check_branch
      %1098 = sbr.rel (%p1096) target = $region76
    $region75: #{vit_forward_pallas.5} parent=5 // pred_region
      %s1099 = ssub.s32 %s18, 2
      // Predicated region
      $region77: #{vit_forward_pallas.5} parent=75 // pred_check
        %p1100 = pneg %p304
      $region78: #{vit_forward_pallas.5} parent=75 // pred_check_branch
        %1102 = sbr.rel (%p1100) target = $region80
      $region79: #{vit_forward_pallas.5} parent=75 // pred_region
        %p1103 = scmp.lt.s32.totalorder %s24, 1
        %s1104 = scalar_select %p1103, %s24, 1
        %s1105 = smul.addr %s1104, 2
        %s1106 = smul.addr %s1105, 8
        %s1107 = scalar_lea.vmem %s12, %s1106
      $region80: #{vit_forward_pallas.5} parent=75 // pred_fallthru
        _
    $region76: #{vit_forward_pallas.5} parent=5 // pred_fallthru
      _
  $region6: #{vit_forward_pallas.5} parent=0 // loop_footer
    %s22 = sadd.s32 1, %s18
  $region7: #{vit_forward_pallas.5} parent=0 // loop_footer_branch
    %17 = sbr.rel target = $region3
  $region8: #{vit_forward_pallas.5} parent=0 // loop_exit
    _

// kernel: tile.8
$region0: #{tile.8}
  #allocation0 [shape = 's32[1]{0}', space=sflag, size = 0x4, scoped, tag = 'scoped memory for tile.8']
  %s0 = inlined_call_operand.vmem [shape: f32[2], index: 0, kind: input, shape index: {}]
  %s1 = inlined_call_operand.vmem [shape: f32[16,2], index: 1, kind: output, shape index: {}]
  // Predicated region
  $region2: #{tile.8} parent=0 // pred_check
    _
  $region3: #{tile.8} parent=0 // pred_check_branch
    %3 = sbr.rel (0) target = $region5
  $region4: #{tile.8} parent=0 // pred_region
    _
  $region5: #{tile.8} parent=0 // pred_fallthru
    _
  %v4 = vld [vmem:[%s0] ss:$0 sm:$0xff]
  %5 = vst [vmem:[%s1] sm:$0xff] %v4
  %s6 = scalar_lea.vmem %s1, 8
  %7 = vst [vmem:[%s6] sm:$0xff] %v4

// kernel: tile.9
$region0: #{tile.9}
  %s0 = inlined_call_operand.vmem [shape: f32[16,2], index: 0, kind: input, shape index: {}]
  %s1 = inlined_call_operand.vmem [shape: f32[1,32], index: 1, kind: output, shape index: {}]
  $region1: #{tile.9} parent=0
    #allocation0 [shape = 'u8[4096]{0}', space=vmem, size = 0x1000, scoped, tag = 'scoped mem for output reshape']
    %v2 = vld [vmem:[%s0] sm:$0x1]
    %vm3 = vcmask 15360
    %4 = vst.msk [vmem:[#allocation0] sm:$0x1] %vm3, %v2
    %s5 = scalar_lea.vmem %s0, 15
    %v6 = vld [vmem:[%s5] sm:$0x1]
    %7 = vrot.lane.b32.xlu0 %v6, 30
    %v8 = vpop.permute.xlu0 %7
    %vm9 = vcmask 261360
    %10 = vst.msk [vmem:[#allocation0] sm:$0x1] %vm9, %v8
    %s11 = scalar_lea.vmem %s0, 14
    %v12 = vld [vmem:[%s11] sm:$0x1]
    %13 = vrot.lane.b32.xlu0 %v12, 28
    %v14 = vpop.permute.xlu0 %13
    %vm15 = vcmask 244960
    %16 = vst.msk [vmem:[#allocation0] sm:$0x1] %vm15, %v14
    %s17 = scalar_lea.vmem %s0, 13
    %v18 = vld [vmem:[%s17] sm:$0x1]
    %19 = vrot.lane.b32.xlu0 %v18, 26
    %v20 = vpop.permute.xlu0 %19
    %vm21 = vcmask 228560
    %22 = vst.msk [vmem:[#allocation0] sm:$0x1] %vm21, %v20
    %s23 = scalar_lea.vmem %s0, 12
    %v24 = vld [vmem:[%s23] sm:$0x1]
    %25 = vrot.lane.b32.xlu0 %v24, 24
    %v26 = vpop.permute.xlu0 %25
    %vm27 = vcmask 212160
    %28 = vst.msk [vmem:[#allocation0] sm:$0x1] %vm27, %v26
    %s29 = scalar_lea.vmem %s0, 11
    %v30 = vld [vmem:[%s29] sm:$0x1]
    %31 = vrot.lane.b32.xlu0 %v30, 22
    %v32 = vpop.permute.xlu0 %31
    %vm33 = vcmask 195760
    %34 = vst.msk [vmem:[#allocation0] sm:$0x1] %vm33, %v32
    %s35 = scalar_lea.vmem %s0, 10
    %v36 = vld [vmem:[%s35] sm:$0x1]
    %37 = vrot.lane.b32.xlu0 %v36, 20
    %v38 = vpop.permute.xlu0 %37
    %vm39 = vcmask 179360
    %40 = vst.msk [vmem:[#allocation0] sm:$0x1] %vm39, %v38
    %s41 = scalar_lea.vmem %s0, 9
    %v42 = vld [vmem:[%s41] sm:$0x1]
    %43 = vrot.lane.b32.xlu0 %v42, 18
    %v44 = vpop.permute.xlu0 %43
    %vm45 = vcmask 162960
    %46 = vst.msk [vmem:[#allocation0] sm:$0x1] %vm45, %v44
    %s47 = scalar_lea.vmem %s0, 8
    %v48 = vld [vmem:[%s47] sm:$0x1]
    %49 = vrot.lane.b32.xlu0 %v48, 16
    %v50 = vpop.permute.xlu0 %49
    %vm51 = vcmask 146560
    %52 = vst.msk [vmem:[#allocation0] sm:$0x1] %vm51, %v50
    %s53 = scalar_lea.vmem %s0, 7
    %v54 = vld [vmem:[%s53] sm:$0x1]
    %55 = vrot.lane.b32.xlu0 %v54, 14
    %v56 = vpop.permute.xlu0 %55
    %vm57 = vcmask 130160
    %58 = vst.msk [vmem:[#allocation0] sm:$0x1] %vm57, %v56
    %s59 = scalar_lea.vmem %s0, 6
    %v60 = vld [vmem:[%s59] sm:$0x1]
    %61 = vrot.lane.b32.xlu0 %v60, 12
    %v62 = vpop.permute.xlu0 %61
    %vm63 = vcmask 113760
    %64 = vst.msk [vmem:[#allocation0] sm:$0x1] %vm63, %v62
    %s65 = scalar_lea.vmem %s0, 5
    %v66 = vld [vmem:[%s65] sm:$0x1]
    %67 = vrot.lane.b32.xlu0 %v66, 10
    %v68 = vpop.permute.xlu0 %67
    %vm69 = vcmask 97360
    %70 = vst.msk [vmem:[#allocation0] sm:$0x1] %vm69, %v68
    %s71 = scalar_lea.vmem %s0, 4
    %v72 = vld [vmem:[%s71] sm:$0x1]
    %73 = vrot.lane.b32.xlu0 %v72, 8
    %v74 = vpop.permute.xlu0 %73
    %vm75 = vcmask 80960
    %76 = vst.msk [vmem:[#allocation0] sm:$0x1] %vm75, %v74
    %s77 = scalar_lea.vmem %s0, 3
    %v78 = vld [vmem:[%s77] sm:$0x1]
    %79 = vrot.lane.b32.xlu0 %v78, 6
    %v80 = vpop.permute.xlu0 %79
    %vm81 = vcmask 64560
    %82 = vst.msk [vmem:[#allocation0] sm:$0x1] %vm81, %v80
    %s83 = scalar_lea.vmem %s0, 2
    %v84 = vld [vmem:[%s83] sm:$0x1]
    %85 = vrot.lane.b32.xlu0 %v84, 4
    %v86 = vpop.permute.xlu0 %85
    %vm87 = vcmask 48160
    %88 = vst.msk [vmem:[#allocation0] sm:$0x1] %vm87, %v86
    %s89 = scalar_lea.vmem %s0, 1
    %v90 = vld [vmem:[%s89] sm:$0x1]
    %91 = vrot.lane.b32.xlu0 %v90, 2
    %v92 = vpop.permute.xlu0 %91
    %vm93 = vcmask 31760
    %94 = vst.msk [vmem:[#allocation0] sm:$0x1] %vm93, %v92
    %s96 = sshllo.u32 0, 1
    %v98 = vld [vmem:[#allocation0] sm:%s96]
    %s99 = sshllo.u32 0, 1
    %100 = vst [vmem:[%s1] sm:%s99] %v98

// kernel: vit_forward_pallas.7
$region0: #{vit_forward_pallas.7}
  #allocation0 [shape = 'u32[]', space=smem, size = 0x4, offset = 0x4, fixed_abs, tag = 'smem constant byte address 0x4 - core index']
  #allocation1 [shape = 'u32[144,128]{1,0:T(1,128)}', space=vmem, size = 0x12000, scoped, tag = 'internal scratch']
  %s0 = inlined_call_operand.vmem [shape: f32[32,32], index: 0, kind: input, shape index: {}]
  %s1 = inlined_call_operand.vmem [shape: f32[1,32], index: 1, kind: input, shape index: {}]
  %s2 = inlined_call_operand.vmem [shape: f32[1,32], index: 2, kind: input, shape index: {}]
  %s3 = inlined_call_operand.vmem [shape: bf16[32,32], index: 3, kind: input, shape index: {}]
  %s4 = inlined_call_operand.vmem [shape: f32[1,32], index: 4, kind: input, shape index: {}]
  %s5 = inlined_call_operand.vmem [shape: f32[32,32], index: 5, kind: input, shape index: {}]
  %s6 = inlined_call_operand.vmem [shape: f32[32,32], index: 6, kind: output, shape index: {}]
  %s7 = sld [smem:[#allocation0]]
  $region34: #{vit_forward_pallas.7} parent=0
    _
  %s9 = ssub.s32 1, %s7
  %s10 = scalar_select 0, %s9, %s7
  // Predicated region
  $region2: #{vit_forward_pallas.7} parent=0 // pred_check
    _
  $region3: #{vit_forward_pallas.7} parent=0 // pred_check_branch
    %12 = sbr.rel (0) target = $region5
  $region4: #{vit_forward_pallas.7} parent=0 // pred_region
    _
  $region5: #{vit_forward_pallas.7} parent=0 // pred_fallthru
    _
  // Predicated region
  $region6: #{vit_forward_pallas.7} parent=0 // pred_check
    _
  $region7: #{vit_forward_pallas.7} parent=0 // pred_check_branch
    %14 = sbr.rel (0) target = $region9
  $region8: #{vit_forward_pallas.7} parent=0 // pred_region
    _
  $region9: #{vit_forward_pallas.7} parent=0 // pred_fallthru
    _
  // Predicated region
  $region10: #{vit_forward_pallas.7} parent=0 // pred_check
    _
  $region11: #{vit_forward_pallas.7} parent=0 // pred_check_branch
    %16 = sbr.rel (0) target = $region13
  $region12: #{vit_forward_pallas.7} parent=0 // pred_region
    _
  $region13: #{vit_forward_pallas.7} parent=0 // pred_fallthru
    _
  // Predicated region
  $region14: #{vit_forward_pallas.7} parent=0 // pred_check
    _
  $region15: #{vit_forward_pallas.7} parent=0 // pred_check_branch
    %18 = sbr.rel (0) target = $region17
  $region16: #{vit_forward_pallas.7} parent=0 // pred_region
    _
  $region17: #{vit_forward_pallas.7} parent=0 // pred_fallthru
    _
  // Predicated region
  $region18: #{vit_forward_pallas.7} parent=0 // pred_check
    _
  $region19: #{vit_forward_pallas.7} parent=0 // pred_check_branch
    %20 = sbr.rel (0) target = $region21
  $region20: #{vit_forward_pallas.7} parent=0 // pred_region
    _
  $region21: #{vit_forward_pallas.7} parent=0 // pred_fallthru
    _
  // Predicated region
  $region22: #{vit_forward_pallas.7} parent=0 // pred_check
    _
  $region23: #{vit_forward_pallas.7} parent=0 // pred_check_branch
    %22 = sbr.rel (0) target = $region25
  $region24: #{vit_forward_pallas.7} parent=0 // pred_region
    _
  $region25: #{vit_forward_pallas.7} parent=0 // pred_fallthru
    _
  %v24 = vld [vmem:[%s0] sm:$0xff]
  %v25 = vld [vmem:[%s0 + $0x8] sm:$0xff]
  %v26 = vld [vmem:[%s0 + $0x10] sm:$0xff]
  %v27 = vld [vmem:[%s0 + $0x18] sm:$0xff]
  %v28 = vld [vmem:[%s1] sm:$0x1]
  %v29 = vld [vmem:[%s2] sm:$0x1]
  %vm30 = vcmask 261120
  %v31 = vsel %vm30, %v24, 0.0
  %32 = vadd.xlane.f32.xlu0 %v31
  %v33 = vpop.xlane.xlu0 %32
  %v34 = vsel %vm30, %v25, 0.0
  %35 = vadd.xlane.f32.xlu0 %v34
  %v36 = vpop.xlane.xlu0 %35
  %v37 = vsel %vm30, %v26, 0.0
  %38 = vadd.xlane.f32.xlu0 %v37
  %v39 = vpop.xlane.xlu0 %38
  %v40 = vsel %vm30, %v27, 0.0
  %41 = vadd.xlane.f32.xlu0 %v40
  %v42 = vpop.xlane.xlu0 %41
  %v43 = vrcp.pop 32.0
  %v44 = vmul.f32 %v33, %v43
  %v45 = vmul.f32 %v36, %v43
  %v46 = vmul.f32 %v39, %v43
  %v47 = vmul.f32 %v42, %v43
  %v48 = vsub.f32 %v24, %v44
  %v49 = vsub.f32 %v25, %v45
  %v50 = vsub.f32 %v26, %v46
  %v51 = vsub.f32 %v27, %v47
  %v52 = vmul.f32 %v48, %v48
  %v53 = vmul.f32 %v49, %v49
  %v54 = vmul.f32 %v50, %v50
  %v55 = vmul.f32 %v51, %v51
  %v56 = vsel %vm30, %v52, 0.0
  %57 = vadd.xlane.f32.xlu0 %v56
  %v58 = vpop.xlane.xlu0 %57
  %v59 = vsel %vm30, %v53, 0.0
  %60 = vadd.xlane.f32.xlu0 %v59
  %v61 = vpop.xlane.xlu0 %60
  %v62 = vsel %vm30, %v54, 0.0
  %63 = vadd.xlane.f32.xlu0 %v62
  %v64 = vpop.xlane.xlu0 %63
  %v65 = vsel %vm30, %v55, 0.0
  %66 = vadd.xlane.f32.xlu0 %v65
  %v67 = vpop.xlane.xlu0 %66
  %v68 = vmul.f32 %v58, %v43
  %v69 = vmul.f32 %v61, %v43
  %v70 = vmul.f32 %v64, %v43
  %v71 = vmul.f32 %v67, %v43
  %v72 = vadd.f32 %v68, 1e-05
  %v73 = vadd.f32 %v69, 1e-05
  %v74 = vadd.f32 %v70, 1e-05
  %v75 = vadd.f32 %v71, 1e-05
  %v76 = vrsqrt.pop %v72
  %v77 = vrsqrt.pop %v73
  %v78 = vrsqrt.pop %v74
  %v79 = vrsqrt.pop %v75
  %v80 = vmul.f32 %v48, %v76
  %v81 = vmul.f32 %v49, %v77
  %v82 = vmul.f32 %v50, %v78
  %v83 = vmul.f32 %v51, %v79
  %v85 = vlaneseq
  %v86 = vshrl.u32 %v85, 7
  %v87 = vsub.s32 0, %v86
  %v88 = vrot.slane %v28, %v87
  %v90 = vmul.f32 %v80, %v88
  %v91 = vmul.f32 %v81, %v88
  %v92 = vmul.f32 %v82, %v88
  %v93 = vmul.f32 %v83, %v88
  %v95 = vlaneseq
  %v96 = vshrl.u32 %v95, 7
  %v97 = vsub.s32 0, %v96
  %v98 = vrot.slane %v29, %v97
  %v100 = vadd.f32 %v90, %v98
  %v101 = vadd.f32 %v91, %v98
  %v102 = vadd.f32 %v92, %v98
  %v103 = vadd.f32 %v93, %v98
  %v104 = vpack.c.bf16 %v101, %v100
  %v105 = vpack.c.bf16 %v103, %v102
  %v106 = vld [vmem:[%s3] sm:$0xf]
  %v107 = vld [vmem:[%s3 + $0x4] sm:$0xf]
  %v108 = vld [vmem:[%s3 + $0x8] sm:$0xf]
  %v109 = vld [vmem:[%s3 + $0xc] sm:$0xf]
  %v110 = vld [vmem:[%s4] sm:$0x1]
  %v112 = vlaneseq
  %v113 = vshrl.u32 %v112, 7
  %v114 = vsub.s32 0, %v113
  %v115 = vrot.slane %v110, %v114
  %v121 = vunpack.c.l.b16 %v106
  %v122 = vunpack.c.l.b16 %v107
  %v123 = vunpack.c.l.b16 %v108
  %v124 = vunpack.c.l.b16 %v109
  %v125 = vpack.c.b16 %v122, %v121
  %v126 = vpack.c.b16 %v124, %v123
  %v130 = vsel %vm30, %v104, 0
  %v133 = vsel %vm30, %v105, 0
  %135 = vmatprep.subr.bf16.mxu0 0
  %136 = vmatpush1.bf16.msra.mxu0 %v125
  %137 = vmatprep.subr.bf16.mxu0 0
  %138 = vmatpush1.bf16.msra.mxu0 %v126
  %139 = vmatprep.subr.bf16.mxu0 0
  %140 = vmatpush1.bf16.msra.mxu0 0
  %141 = vmatprep.subr.bf16.mxu0 0
  %142 = vmatpush1.bf16.msra.mxu0 0
  %143 = vmatprep.subr.bf16.mxu0 0
  %144 = vmatpush1.bf16.msra.mxu0 0
  %145 = vmatprep.subr.bf16.mxu0 0
  %146 = vmatpush1.bf16.msra.mxu0 0
  %147 = vmatprep.subr.bf16.mxu0 0
  %148 = vmatpush1.bf16.msra.mxu0 0
  %149 = vmatprep.subr.bf16.mxu0 0
  %150 = vmatpush1.bf16.msra.mxu0 0
  %151 = vmatprep.subr.bf16.mxu0 0
  %152 = vmatpush1.bf16.msra.mxu0 0
  %153 = vmatprep.subr.bf16.mxu0 0
  %154 = vmatpush1.bf16.msra.mxu0 0
  %155 = vmatprep.subr.bf16.mxu0 0
  %156 = vmatpush1.bf16.msra.mxu0 0
  %157 = vmatprep.subr.bf16.mxu0 0
  %158 = vmatpush1.bf16.msra.mxu0 0
  %159 = vmatprep.subr.bf16.mxu0 0
  %160 = vmatpush1.bf16.msra.mxu0 0
  %161 = vmatprep.subr.bf16.mxu0 0
  %162 = vmatpush1.bf16.msra.mxu0 0
  %163 = vmatprep.subr.bf16.mxu0 0
  %164 = vmatpush1.bf16.msra.mxu0 0
  %165 = vmatprep.subr.bf16.mxu0 0
  %166 = vmatpush1.bf16.msra.mxu0 0
  %167 = vmatprep.mubr.bf16.mxu0 0
  %168 = vmatmul.mubr.bf16.gmra.mrb[0].mxu0 %v130
  %v169 = vpop.f32.mrb[0].mxu0
  %v170 = vadd.f32 %v115, %v169
  %v171 = vpop.f32.mrb[0].mxu0
  %v172 = vpop.f32.mrb[0].mxu0
  %v173 = vadd.f32 %v115, %v172
  %v174 = vpop.f32.mrb[0].mxu0
  %175 = vmatprep.mubr.bf16.mxu0 0
  %176 = vmatmul.mubr.bf16.gmra.mrb[0].mxu0 %v133
  %v177 = vpop.f32.mrb[0].mxu0
  %v178 = vadd.f32 %v115, %v177
  %v179 = vpop.f32.mrb[0].mxu0
  %v180 = vpop.f32.mrb[0].mxu0
  %v181 = vadd.f32 %v115, %v180
  %v182 = vpop.f32.mrb[0].mxu0
  %183 = vdwg.mxu0
  %v184 = vld [vmem:[%s5] sm:$0xff]
  %v185 = vld [vmem:[%s5 + $0x8] sm:$0xff]
  %v186 = vld [vmem:[%s5 + $0x10] sm:$0xff]
  %v187 = vld [vmem:[%s5 + $0x18] sm:$0xff]
  %v188 = vadd.f32 %v170, %v184
  %v189 = vadd.f32 %v173, %v185
  %v190 = vadd.f32 %v178, %v186
  %v191 = vadd.f32 %v181, %v187
  %192 = vst.msk [vmem:[%s6] sm:$0xff] %vm30, %v188
  %193 = vst.msk [vmem:[%s6 + $0x8] sm:$0xff] %vm30, %v189
  %194 = vst.msk [vmem:[%s6 + $0x10] sm:$0xff] %vm30, %v190
  %195 = vst.msk [vmem:[%s6 + $0x18] sm:$0xff] %vm30, %v191
  // Predicated region
  $region26: #{vit_forward_pallas.7} parent=0 // pred_check
    _
  $region27: #{vit_forward_pallas.7} parent=0 // pred_check_branch
    %197 = sbr.rel (0) target = $region29
  $region28: #{vit_forward_pallas.7} parent=0 // pred_region
    _
  $region29: #{vit_forward_pallas.7} parent=0 // pred_fallthru
    _
  // Predicated region
  $region30: #{vit_forward_pallas.7} parent=0 // pred_check
    _
  $region31: #{vit_forward_pallas.7} parent=0 // pred_check_branch
    %199 = sbr.rel (0) target = $region33
  $region32: #{vit_forward_pallas.7} parent=0 // pred_region
    _
  $region33: #{vit_forward_pallas.7} parent=0 // pred_fallthru
    _

</llo_original>
